<compile_context>
chip_gen: v7x
topology: tpu7x:2x2x1
jax: 0.10.0
libtpu: 0.0.40
codegen_flags: <defaults>
</compile_context>

<pallas_src>
import functools

import numpy as np
import jax
import jax.numpy as jnp
from jax.experimental import pallas as pl
from jax.experimental.pallas import tpu as pltpu

HIDDEN = 256
TILE_B = 512  # batch rows per grid step (activations at 512 rows are <4 MiB of VMEM)


def _round_up(x, m):
    return ((x + m - 1) // m) * m


def copsl_kernel(pref_ref, w0_ref, b0_ref, w1_ref, b1_ref, w2_ref, b2_ref, out_ref):
    """All T towers fused into three matmuls; one lane-dense compact output write."""
    # shared bottom (computed once): relu(pref @ W0 + b0)   -- K = n_obj (tiny)
    x = jnp.dot(pref_ref[...].astype(jnp.bfloat16), w0_ref[...],
                preferred_element_type=jnp.float32)
    x = jnp.maximum(x + b0_ref[...], 0.0)                       # (tile_b, 256) f32
    # all task hidden layers as one wide matmul: relu(x @ W1_all + b1_all)
    h = jnp.dot(x.astype(jnp.bfloat16), w1_ref[...],
                preferred_element_type=jnp.float32)
    h = jnp.maximum(h + b1_ref[...], 0.0)                       # (tile_b, T*256) f32
    # all task output layers as one block-diagonal matmul (compact column packing)
    z = jnp.dot(h.astype(jnp.bfloat16), w2_ref[...],
                preferred_element_type=jnp.float32) + b2_ref[...]
    out_ref[...] = jax.nn.sigmoid(z)                            # (tile_b, sumD_pad)


def pack_params(params, n_dim, n_obj):
    """Pack / transpose / compact / cast weights ONCE (outside the hot forward path)."""
    T = len(n_dim)
    offs = [0]
    for d in n_dim:
        offs.append(offs[-1] + d)
    d_sum = offs[-1]
    d_sum_pad = _round_up(max(d_sum, 128), 128)

    # shared bottom: keep K = n_obj (no 128-lane padding of the contraction dim)
    w0 = params["w0"].T.astype(jnp.bfloat16)                       # (n_obj, 256)
    b0 = params["b0"].reshape(1, HIDDEN).astype(jnp.float32)

    # hidden layers concatenated along the output (lane) dim: (256, T*256)
    w1_all = jnp.concatenate([params[f"w1_{i}"].T for i in range(T)],
                             axis=1).astype(jnp.bfloat16)
    b1_all = jnp.concatenate([params[f"b1_{i}"] for i in range(T)]
                             ).reshape(1, T * HIDDEN).astype(jnp.float32)

    # output layers as a block-diagonal (T*256, sumD_pad) matrix at CUMULATIVE column
    # offsets (compact packing), plus packed bias.
    w2_blk = jnp.zeros((T * HIDDEN, d_sum_pad), jnp.float32)
    b2_all = jnp.zeros((1, d_sum_pad), jnp.float32)
    for i in range(T):
        c0 = offs[i]
        w2_blk = w2_blk.at[i * HIDDEN:(i + 1) * HIDDEN,
                           c0:c0 + n_dim[i]].set(params[f"w2_{i}"].T)
        b2_all = b2_all.at[0, c0:c0 + n_dim[i]].set(params[f"b2_{i}"])
    w2_blk = w2_blk.astype(jnp.bfloat16)

    return {"w0": w0, "b0": b0, "w1": w1_all, "b1": b1_all,
            "w2": w2_blk, "b2": b2_all}


@functools.partial(jax.jit, static_argnames=("n_dim", "use_buffered"))
def copsl_forward(pref, packed, n_dim, use_buffered=True):
    """pref: (B, n_obj) float32. Returns list of (B, n_dim[i]) float32 arrays."""
    B, n_obj = pref.shape
    T = len(n_dim)
    d_sum_pad = packed["w2"].shape[1]

    # Batch bucketing: power-of-two pad for small batches, TILE_B multiples for large
    # (keeps the set of compiled shapes small when B varies between calls).
    if B <= TILE_B:
        B_pad = max(8, pl.next_power_of_2(B))
        tile_b = B_pad
    else:
        B_pad = _round_up(B, TILE_B)
        tile_b = TILE_B
    n_btiles = B_pad // tile_b

    # Pad ONLY the batch dim; keep last dim = n_obj (no per-call 128-lane zero slab).
    pref_p = jnp.pad(pref.astype(jnp.float32), ((0, B_pad - B), (0, 0)))

    def wspec(shape):
        # Constant-index weight/bias blocks: single-buffer them (no pipelining needed).
        if use_buffered:
            return pl.BlockSpec(shape, lambda i: (0, 0), pipeline_mode=pl.Buffered(1))
        return pl.BlockSpec(shape, lambda i: (0, 0))

    out = pl.pallas_call(
        copsl_kernel,
        out_shape=jax.ShapeDtypeStruct((B_pad, d_sum_pad), jnp.float32),
        grid_spec=pltpu.PrefetchScalarGridSpec(
            num_scalar_prefetch=0,
            grid=(n_btiles,),
            in_specs=[
                pl.BlockSpec((tile_b, n_obj), lambda i: (i, 0)),   # pref tile (full K)
                wspec((n_obj, HIDDEN)),                            # W0 (bf16)
                wspec((1, HIDDEN)),                                # b0 (f32)
                wspec((HIDDEN, T * HIDDEN)),                       # W1_all (bf16)
                wspec((1, T * HIDDEN)),                            # b1_all (f32)
                wspec((T * HIDDEN, d_sum_pad)),                    # W2 block-diag (bf16)
                wspec((1, d_sum_pad)),                             # b2_all (f32)
            ],
            out_specs=pl.BlockSpec((tile_b, d_sum_pad), lambda i: (i, 0)),
        ),
        compiler_params=pltpu.CompilerParams(
            dimension_semantics=("parallel",),     # batch tiles independent
            vmem_limit_bytes=48 * 1024 * 1024,     # explicit ceiling (v7x-safe)
        ),
    )(pref_p, packed["w0"], packed["b0"], packed["w1"], packed["b1"],
      packed["w2"], packed["b2"])

    # Slice each task's columns out of the compact slab (cumulative offsets).
    offs = [0]
    for d in n_dim:
        offs.append(offs[-1] + d)
    return [out[:B, offs[i]:offs[i + 1]] for i in range(T)]


def copsl_forward_f64(pref, packed, n_dim):
    """Matches PyTorch `.to(torch.float64)`: f32 compute on device, exact f32->f64
    upcast done on host (f64 is software-emulated on TPU)."""
    try:
        outs = copsl_forward(pref, packed, n_dim, True)
        outs = [jax.block_until_ready(o) for o in outs]
    except Exception:
        # Fallback if pipeline_mode=pl.Buffered(1) is not supported by this JAX build.
        outs = copsl_forward(pref, packed, n_dim, False)
        outs = [jax.block_until_ready(o) for o in outs]
    return [np.asarray(o).astype(np.float64) for o in outs]


def init_params(key, n_dim, n_obj):
    """Deterministic synthetic init (uniform fan-in scaling, like torch Linear default)."""
    T = len(n_dim)
    keys = jax.random.split(key, 2 + 4 * T)
    p = {}

    def lin(kw, kb, fan_in, fan_out):
        bound = 1.0 / jnp.sqrt(fan_in)
        w = jax.random.uniform(kw, (fan_out, fan_in), jnp.float32, -bound, bound)
        b = jax.random.uniform(kb, (fan_out,), jnp.float32, -bound, bound)
        return w, b

    p["w0"], p["b0"] = lin(keys[0], keys[1], n_obj, HIDDEN)
    for i in range(T):
        k = keys[2 + 4 * i: 2 + 4 * (i + 1)]
        p[f"w1_{i}"], p[f"b1_{i}"] = lin(k[0], k[1], HIDDEN, HIDDEN)
        p[f"w2_{i}"], p[f"b2_{i}"] = lin(k[2], k[3], HIDDEN, n_dim[i])
    return p


def reference_forward(pref, params, n_dim):
    """Pure-JAX f32 reference of the PyTorch forward."""
    x = jnp.maximum(pref @ params["w0"].T + params["b0"], 0.0)
    outs = []
    for i in range(len(n_dim)):
        h = jnp.maximum(x @ params[f"w1_{i}"].T + params[f"b1_{i}"], 0.0)
        z = h @ params[f"w2_{i}"].T + params[f"b2_{i}"]
        outs.append(jax.nn.sigmoid(z))
    return outs


if __name__ == "__main__":
    n_dim = (6, 4)   # two tasks with decision dims 6 and 4
    n_obj = 3        # 3 objectives -> preference vector size
    batch = 2

    key = jax.random.PRNGKey(0)
    k_param, k_pref = jax.random.split(key)
    params = init_params(k_param, n_dim, n_obj)
    pref = jax.random.uniform(k_pref, (batch, n_obj), jnp.float32)

    # Pack / cast weights once (outside the hot per-call path).
    packed = pack_params(params, n_dim, n_obj)
    packed = jax.tree_util.tree_map(jax.block_until_ready, packed)

    outs = copsl_forward_f64(pref, packed, n_dim)

    # Tolerance relaxed for bf16 MXU inputs (f32 accumulation keeps error small;
    # sigmoid outputs are O(0.5)).
    refs = reference_forward(pref, params, n_dim)
    for o, r, d in zip(outs, refs, n_dim):
        assert o.shape == (batch, d) and o.dtype == np.float64, (o.shape, o.dtype)
        assert np.allclose(o, np.asarray(r, dtype=np.float64), atol=3e-2, rtol=3e-2), (
            np.max(np.abs(o - np.asarray(r, dtype=np.float64))))

    print("KERNEL_OK")
</pallas_src>

<mosaic_0001>
module attributes {stable_mosaic.version = 11 : i64} {
  func.func @copsl_kernel(%arg0: i32, %arg1: memref<8x3xf32, #tpu.memory_space<vmem>>, %arg2: memref<3x256xbf16, #tpu.memory_space<vmem>>, %arg3: memref<1x256xf32, #tpu.memory_space<vmem>>, %arg4: memref<256x512xbf16, #tpu.memory_space<vmem>>, %arg5: memref<1x512xf32, #tpu.memory_space<vmem>>, %arg6: memref<512x128xbf16, #tpu.memory_space<vmem>>, %arg7: memref<1x128xf32, #tpu.memory_space<vmem>>, %arg8: memref<8x128xf32, #tpu.memory_space<vmem>>) attributes {dimension_semantics = [#tpu.dimension_semantics<parallel>], iteration_bounds = array<i64: 1>, scalar_prefetch = 0 : i64, scratch_operands = 0 : i64, tpu.core_type = #tpu.core_type<tc>, window_params = [{transform_indices = @transform_0, window_bounds = array<i64: 8, 3>}, {pipeline_mode = #tpu.pipeline_mode<synchronous>, transform_indices = @transform_1, window_bounds = array<i64: 3, 256>}, {pipeline_mode = #tpu.pipeline_mode<synchronous>, transform_indices = @transform_2, window_bounds = array<i64: 1, 256>}, {pipeline_mode = #tpu.pipeline_mode<synchronous>, transform_indices = @transform_3, window_bounds = array<i64: 256, 512>}, {pipeline_mode = #tpu.pipeline_mode<synchronous>, transform_indices = @transform_4, window_bounds = array<i64: 1, 512>}, {pipeline_mode = #tpu.pipeline_mode<synchronous>, transform_indices = @transform_5, window_bounds = array<i64: 512, 128>}, {pipeline_mode = #tpu.pipeline_mode<synchronous>, transform_indices = @transform_6, window_bounds = array<i64: 1, 128>}, {transform_indices = @transform_7, window_bounds = array<i64: 8, 128>}]} {
    %c0 = arith.constant 0 : index
    %c0_0 = arith.constant 0 : index
    %0 = vector.load %arg1[%c0, %c0_0] : memref<8x3xf32, #tpu.memory_space<vmem>>, vector<8x3xf32>
    %1 = arith.truncf %0 : vector<8x3xf32> to vector<8x3xbf16>
    %c0_1 = arith.constant 0 : index
    %c0_2 = arith.constant 0 : index
    %2 = vector.load %arg2[%c0_1, %c0_2] : memref<3x256xbf16, #tpu.memory_space<vmem>>, vector<3x256xbf16>
    %cst = arith.constant dense<0.000000e+00> : vector<8x256xf32>
    %3 = tpu.matmul %1, %2, %cst {dimension_numbers = #tpu.dot_dimension_numbers<[1], [0], [0], [1], [0, 0, 1, 1], [], []>} : vector<8x3xbf16>, vector<3x256xbf16>, vector<8x256xf32> -> vector<8x256xf32>
    %c0_3 = arith.constant 0 : index
    %c0_4 = arith.constant 0 : index
    %4 = vector.load %arg3[%c0_3, %c0_4] : memref<1x256xf32, #tpu.memory_space<vmem>>, vector<1x256xf32>
    %5 = vector.broadcast %4 : vector<1x256xf32> to vector<8x256xf32>
    %6 = arith.addf %3, %5 : vector<8x256xf32>
    %cst_5 = arith.constant 0.000000e+00 : f32
    %7 = vector.broadcast %cst_5 : f32 to vector<8x256xf32>
    %8 = arith.maximumf %6, %7 : vector<8x256xf32>
    %9 = arith.truncf %8 : vector<8x256xf32> to vector<8x256xbf16>
    %c0_6 = arith.constant 0 : index
    %c0_7 = arith.constant 0 : index
    %10 = vector.load %arg4[%c0_6, %c0_7] : memref<256x512xbf16, #tpu.memory_space<vmem>>, vector<256x512xbf16>
    %cst_8 = arith.constant dense<0.000000e+00> : vector<8x512xf32>
    %11 = tpu.matmul %9, %10, %cst_8 {dimension_numbers = #tpu.dot_dimension_numbers<[1], [0], [0], [1], [0, 0, 1, 1], [], []>} : vector<8x256xbf16>, vector<256x512xbf16>, vector<8x512xf32> -> vector<8x512xf32>
    %c0_9 = arith.constant 0 : index
    %c0_10 = arith.constant 0 : index
    %12 = vector.load %arg5[%c0_9, %c0_10] : memref<1x512xf32, #tpu.memory_space<vmem>>, vector<1x512xf32>
    %13 = vector.broadcast %12 : vector<1x512xf32> to vector<8x512xf32>
    %14 = arith.addf %11, %13 : vector<8x512xf32>
    %cst_11 = arith.constant 0.000000e+00 : f32
    %15 = vector.broadcast %cst_11 : f32 to vector<8x512xf32>
    %16 = arith.maximumf %14, %15 : vector<8x512xf32>
    %17 = arith.truncf %16 : vector<8x512xf32> to vector<8x512xbf16>
    %c0_12 = arith.constant 0 : index
    %c0_13 = arith.constant 0 : index
    %18 = vector.load %arg6[%c0_12, %c0_13] : memref<512x128xbf16, #tpu.memory_space<vmem>>, vector<512x128xbf16>
    %cst_14 = arith.constant dense<0.000000e+00> : vector<8x128xf32>
    %19 = tpu.matmul %17, %18, %cst_14 {dimension_numbers = #tpu.dot_dimension_numbers<[1], [0], [0], [1], [0, 0, 1, 1], [], []>} : vector<8x512xbf16>, vector<512x128xbf16>, vector<8x128xf32> -> vector<8x128xf32>
    %c0_15 = arith.constant 0 : index
    %c0_16 = arith.constant 0 : index
    %20 = vector.load %arg7[%c0_15, %c0_16] : memref<1x128xf32, #tpu.memory_space<vmem>>, vector<1x128xf32>
    %21 = vector.broadcast %20 : vector<1x128xf32> to vector<8x128xf32>
    %22 = arith.addf %19, %21 : vector<8x128xf32>
    %23 = arith.negf %22 : vector<8x128xf32>
    %24 = math.exp %23 : vector<8x128xf32>
    %cst_17 = arith.constant 1.000000e+00 : f32
    %25 = vector.broadcast %cst_17 : f32 to vector<8x128xf32>
    %26 = arith.addf %25, %24 : vector<8x128xf32>
    %27 = arith.divf %25, %26 : vector<8x128xf32>
    %c0_18 = arith.constant 0 : index
    %c0_19 = arith.constant 0 : index
    %28 = vector.load %arg8[%c0_18, %c0_19] : memref<8x128xf32, #tpu.memory_space<vmem>>, vector<8x128xf32>
    tpu.vector_store %arg8[%c0_18, %c0_19], %27 {strides = array<i32>} : memref<8x128xf32, #tpu.memory_space<vmem>>, vector<8x128xf32>,
    return
  }
  func.func @transform_0(%arg0: i32) -> (i32, i32) {
    %c0_i32 = arith.constant 0 : i32
    %c0_i32_0 = arith.constant 0 : i32
    return %arg0, %c0_i32 : i32, i32
  }
  func.func @transform_1(%arg0: i32) -> (i32, i32) {
    %c0_i32 = arith.constant 0 : i32
    %c0_i32_0 = arith.constant 0 : i32
    %c0_i32_1 = arith.constant 0 : i32
    return %c0_i32, %c0_i32_0 : i32, i32
  }
  func.func @transform_2(%arg0: i32) -> (i32, i32) {
    %c0_i32 = arith.constant 0 : i32
    %c0_i32_0 = arith.constant 0 : i32
    %c0_i32_1 = arith.constant 0 : i32
    return %c0_i32, %c0_i32_0 : i32, i32
  }
  func.func @transform_3(%arg0: i32) -> (i32, i32) {
    %c0_i32 = arith.constant 0 : i32
    %c0_i32_0 = arith.constant 0 : i32
    %c0_i32_1 = arith.constant 0 : i32
    return %c0_i32, %c0_i32_0 : i32, i32
  }
  func.func @transform_4(%arg0: i32) -> (i32, i32) {
    %c0_i32 = arith.constant 0 : i32
    %c0_i32_0 = arith.constant 0 : i32
    %c0_i32_1 = arith.constant 0 : i32
    return %c0_i32, %c0_i32_0 : i32, i32
  }
  func.func @transform_5(%arg0: i32) -> (i32, i32) {
    %c0_i32 = arith.constant 0 : i32
    %c0_i32_0 = arith.constant 0 : i32
    %c0_i32_1 = arith.constant 0 : i32
    return %c0_i32, %c0_i32_0 : i32, i32
  }
  func.func @transform_6(%arg0: i32) -> (i32, i32) {
    %c0_i32 = arith.constant 0 : i32
    %c0_i32_0 = arith.constant 0 : i32
    %c0_i32_1 = arith.constant 0 : i32
    return %c0_i32, %c0_i32_0 : i32, i32
  }
  func.func @transform_7(%arg0: i32) -> (i32, i32) {
    %c0_i32 = arith.constant 0 : i32
    %c0_i32_0 = arith.constant 0 : i32
    return %arg0, %c0_i32 : i32, i32
  }
}

module attributes {stable_mosaic.version = 11 : i64} {
  func.func @copsl_kernel(%arg0: i32, %arg1: memref<8x3xf32, #tpu.memory_space<vmem>>, %arg2: memref<3x256xbf16, #tpu.memory_space<vmem>>, %arg3: memref<1x256xf32, #tpu.memory_space<vmem>>, %arg4: memref<256x512xbf16, #tpu.memory_space<vmem>>, %arg5: memref<1x512xf32, #tpu.memory_space<vmem>>, %arg6: memref<512x128xbf16, #tpu.memory_space<vmem>>, %arg7: memref<1x128xf32, #tpu.memory_space<vmem>>, %arg8: memref<8x128xf32, #tpu.memory_space<vmem>>) attributes {dimension_semantics = [#tpu.dimension_semantics<parallel>], iteration_bounds = array<i64: 1>, scalar_prefetch = 0 : i64, scratch_operands = 0 : i64, tpu.core_type = #tpu.core_type<tc>, window_params = [{transform_indices = @transform_0, window_bounds = array<i64: 8, 3>}, {pipeline_mode = #tpu.pipeline_mode<synchronous>, transform_indices = @transform_1, window_bounds = array<i64: 3, 256>}, {pipeline_mode = #tpu.pipeline_mode<synchronous>, transform_indices = @transform_2, window_bounds = array<i64: 1, 256>}, {pipeline_mode = #tpu.pipeline_mode<synchronous>, transform_indices = @transform_3, window_bounds = array<i64: 256, 512>}, {pipeline_mode = #tpu.pipeline_mode<synchronous>, transform_indices = @transform_4, window_bounds = array<i64: 1, 512>}, {pipeline_mode = #tpu.pipeline_mode<synchronous>, transform_indices = @transform_5, window_bounds = array<i64: 512, 128>}, {pipeline_mode = #tpu.pipeline_mode<synchronous>, transform_indices = @transform_6, window_bounds = array<i64: 1, 128>}, {transform_indices = @transform_7, window_bounds = array<i64: 8, 128>}]} {
    %c0 = arith.constant 0 : index
    %c0_0 = arith.constant 0 : index
    %0 = vector.load %arg1[%c0, %c0_0] : memref<8x3xf32, #tpu.memory_space<vmem>>, vector<8x3xf32>
    %1 = arith.truncf %0 : vector<8x3xf32> to vector<8x3xbf16>
    %c0_1 = arith.constant 0 : index
    %c0_2 = arith.constant 0 : index
    %2 = vector.load %arg2[%c0_1, %c0_2] : memref<3x256xbf16, #tpu.memory_space<vmem>>, vector<3x256xbf16>
    %cst = arith.constant dense<0.000000e+00> : vector<8x256xf32>
    %3 = tpu.matmul %1, %2, %cst {dimension_numbers = #tpu.dot_dimension_numbers<[1], [0], [0], [1], [0, 0, 1, 1], [], []>} : vector<8x3xbf16>, vector<3x256xbf16>, vector<8x256xf32> -> vector<8x256xf32>
    %c0_3 = arith.constant 0 : index
    %c0_4 = arith.constant 0 : index
    %4 = vector.load %arg3[%c0_3, %c0_4] : memref<1x256xf32, #tpu.memory_space<vmem>>, vector<1x256xf32>
    %5 = vector.broadcast %4 : vector<1x256xf32> to vector<8x256xf32>
    %6 = arith.addf %3, %5 : vector<8x256xf32>
    %cst_5 = arith.constant 0.000000e+00 : f32
    %7 = vector.broadcast %cst_5 : f32 to vector<8x256xf32>
    %8 = arith.maximumf %6, %7 : vector<8x256xf32>
    %9 = arith.truncf %8 : vector<8x256xf32> to vector<8x256xbf16>
    %c0_6 = arith.constant 0 : index
    %c0_7 = arith.constant 0 : index
    %10 = vector.load %arg4[%c0_6, %c0_7] : memref<256x512xbf16, #tpu.memory_space<vmem>>, vector<256x512xbf16>
    %cst_8 = arith.constant dense<0.000000e+00> : vector<8x512xf32>
    %11 = tpu.matmul %9, %10, %cst_8 {dimension_numbers = #tpu.dot_dimension_numbers<[1], [0], [0], [1], [0, 0, 1, 1], [], []>} : vector<8x256xbf16>, vector<256x512xbf16>, vector<8x512xf32> -> vector<8x512xf32>
    %c0_9 = arith.constant 0 : index
    %c0_10 = arith.constant 0 : index
    %12 = vector.load %arg5[%c0_9, %c0_10] : memref<1x512xf32, #tpu.memory_space<vmem>>, vector<1x512xf32>
    %13 = vector.broadcast %12 : vector<1x512xf32> to vector<8x512xf32>
    %14 = arith.addf %11, %13 : vector<8x512xf32>
    %cst_11 = arith.constant 0.000000e+00 : f32
    %15 = vector.broadcast %cst_11 : f32 to vector<8x512xf32>
    %16 = arith.maximumf %14, %15 : vector<8x512xf32>
    %17 = arith.truncf %16 : vector<8x512xf32> to vector<8x512xbf16>
    %c0_12 = arith.constant 0 : index
    %c0_13 = arith.constant 0 : index
    %18 = vector.load %arg6[%c0_12, %c0_13] : memref<512x128xbf16, #tpu.memory_space<vmem>>, vector<512x128xbf16>
    %cst_14 = arith.constant dense<0.000000e+00> : vector<8x128xf32>
    %19 = tpu.matmul %17, %18, %cst_14 {dimension_numbers = #tpu.dot_dimension_numbers<[1], [0], [0], [1], [0, 0, 1, 1], [], []>} : vector<8x512xbf16>, vector<512x128xbf16>, vector<8x128xf32> -> vector<8x128xf32>
    %c0_15 = arith.constant 0 : index
    %c0_16 = arith.constant 0 : index
    %20 = vector.load %arg7[%c0_15, %c0_16] : memref<1x128xf32, #tpu.memory_space<vmem>>, vector<1x128xf32>
    %21 = vector.broadcast %20 : vector<1x128xf32> to vector<8x128xf32>
    %22 = arith.addf %19, %21 : vector<8x128xf32>
    %23 = arith.negf %22 : vector<8x128xf32>
    %24 = math.exp %23 : vector<8x128xf32>
    %cst_17 = arith.constant 1.000000e+00 : f32
    %25 = vector.broadcast %cst_17 : f32 to vector<8x128xf32>
    %26 = arith.addf %25, %24 : vector<8x128xf32>
    %27 = arith.divf %25, %26 : vector<8x128xf32>
    %c0_18 = arith.constant 0 : index
    %c0_19 = arith.constant 0 : index
    %28 = vector.load %arg8[%c0_18, %c0_19] : memref<8x128xf32, #tpu.memory_space<vmem>>, vector<8x128xf32>
    tpu.vector_store %arg8[%c0_18, %c0_19], %27 {strides = array<i32>} : memref<8x128xf32, #tpu.memory_space<vmem>>, vector<8x128xf32>,
    return
  }
  func.func @transform_0(%arg0: i32) -> (i32, i32) {
    %c0_i32 = arith.constant 0 : i32
    %c0_i32_0 = arith.constant 0 : i32
    return %arg0, %c0_i32 : i32, i32
  }
  func.func @transform_1(%arg0: i32) -> (i32, i32) {
    %c0_i32 = arith.constant 0 : i32
    %c0_i32_0 = arith.constant 0 : i32
    %c0_i32_1 = arith.constant 0 : i32
    return %c0_i32, %c0_i32_0 : i32, i32
  }
  func.func @transform_2(%arg0: i32) -> (i32, i32) {
    %c0_i32 = arith.constant 0 : i32
    %c0_i32_0 = arith.constant 0 : i32
    %c0_i32_1 = arith.constant 0 : i32
    return %c0_i32, %c0_i32_0 : i32, i32
  }
  func.func @transform_3(%arg0: i32) -> (i32, i32) {
    %c0_i32 = arith.constant 0 : i32
    %c0_i32_0 = arith.constant 0 : i32
    %c0_i32_1 = arith.constant 0 : i32
    return %c0_i32, %c0_i32_0 : i32, i32
  }
  func.func @transform_4(%arg0: i32) -> (i32, i32) {
    %c0_i32 = arith.constant 0 : i32
    %c0_i32_0 = arith.constant 0 : i32
    %c0_i32_1 = arith.constant 0 : i32
    return %c0_i32, %c0_i32_0 : i32, i32
  }
  func.func @transform_5(%arg0: i32) -> (i32, i32) {
    %c0_i32 = arith.constant 0 : i32
    %c0_i32_0 = arith.constant 0 : i32
    %c0_i32_1 = arith.constant 0 : i32
    return %c0_i32, %c0_i32_0 : i32, i32
  }
  func.func @transform_6(%arg0: i32) -> (i32, i32) {
    %c0_i32 = arith.constant 0 : i32
    %c0_i32_0 = arith.constant 0 : i32
    %c0_i32_1 = arith.constant 0 : i32
    return %c0_i32, %c0_i32_0 : i32, i32
  }
  func.func @transform_7(%arg0: i32) -> (i32, i32) {
    %c0_i32 = arith.constant 0 : i32
    %c0_i32_0 = arith.constant 0 : i32
    return %arg0, %c0_i32 : i32, i32
  }
}

</mosaic_0001>

<llo_original>
// kernel: copsl_forward.1
$region0: #{copsl_forward.1}
  #allocation0 [shape = 'u32[]', space=smem, size = 0x4, offset = 0x4, fixed_abs, tag = 'smem constant byte address 0x4 - core index']
  #allocation1 [shape = 'u32[144,128]{1,0:T(1,128)}', space=vmem, size = 0x12000, scoped, tag = 'internal scratch']
  %s0 = inlined_call_operand.vmem [shape: f32[8,3], index: 0, kind: input, shape index: {}]
  %s1 = inlined_call_operand.vmem [shape: bf16[3,256], index: 1, kind: input, shape index: {}]
  %s2 = inlined_call_operand.vmem [shape: f32[1,256], index: 2, kind: input, shape index: {}]
  %s3 = inlined_call_operand.hbm [shape: bf16[256,512], index: 3, kind: input, shape index: {}]
  %s4 = inlined_call_operand.vmem [shape: f32[1,512], index: 4, kind: input, shape index: {}]
  %s5 = inlined_call_operand.hbm [shape: bf16[512,128], index: 5, kind: input, shape index: {}]
  %s6 = inlined_call_operand.vmem [shape: f32[1,128], index: 6, kind: input, shape index: {}]
  %s7 = inlined_call_operand.vmem [shape: f32[8,128], index: 7, kind: output, shape index: {}]
  %s8 = sld [smem:[#allocation0]]
  $region46: #{copsl_forward.1} parent=0
    _
  %s10 = ssub.s32 1, %s8
  %s11 = scalar_select 0, %s10, %s8
  $region1: #{copsl_forward.1} parent=0
    #allocation2 [shape = 'u8[262144]{0}', space=vmem, size = 0x40000, scoped, tag = 'input window, operand 3, single buffered']
    #allocation3 [shape = 's32[1]{0}', space=sflag, size = 0x4, scoped, tag = 'scoped memory for copsl_forward.1']
    #allocation4 [shape = 'u8[131072]{0}', space=vmem, size = 0x20000, scoped, tag = 'input window, operand 5, single buffered']
    #allocation5 [shape = 's32[1]{0}', space=sflag, size = 0x4, scoped, tag = 'scoped memory for copsl_forward.1']
    %12 = vsyncpa [#allocation3], 0
    %13 = vsyncpa [#allocation5], 0
    // Predicated region
    $region2: #{copsl_forward.1} parent=1 // pred_check
      _
    $region3: #{copsl_forward.1} parent=1 // pred_check_branch
      %15 = sbr.rel (0) target = $region5
    $region4: #{copsl_forward.1} parent=1 // pred_region
      _
    $region5: #{copsl_forward.1} parent=1 // pred_fallthru
      _
    // Predicated region
    $region6: #{copsl_forward.1} parent=1 // pred_check
      _
    $region7: #{copsl_forward.1} parent=1 // pred_check_branch
      %17 = sbr.rel (0) target = $region9
    $region8: #{copsl_forward.1} parent=1 // pred_region
      _
    $region9: #{copsl_forward.1} parent=1 // pred_fallthru
      _
    // Predicated region
    $region10: #{copsl_forward.1} parent=1 // pred_check
      _
    $region11: #{copsl_forward.1} parent=1 // pred_check_branch
      %19 = sbr.rel (0) target = $region13
    $region12: #{copsl_forward.1} parent=1 // pred_region
      _
    $region13: #{copsl_forward.1} parent=1 // pred_fallthru
      _
    // Predicated region
    $region14: #{copsl_forward.1} parent=1 // pred_check
      _
    $region15: #{copsl_forward.1} parent=1 // pred_check_branch
      %21 = sbr.rel (0) target = $region17
    $region16: #{copsl_forward.1} parent=1 // pred_region
      %s23 = ssub.s32 8192, 8192
      %24 = vsyncadd [#allocation3], %s23
      %s25 = sshll.u32 [#allocation2], 4
      %s26 = int_to_ptr.vmem [resolvable:$true] %s25
      %31 = dma.hbm_to_vmem [thread:$0]  %s3, 8192, %s26, [#allocation3], 256, 256, 16
    $region17: #{copsl_forward.1} parent=1 // pred_fallthru
      _
    // Predicated region
    $region18: #{copsl_forward.1} parent=1 // pred_check
      _
    $region19: #{copsl_forward.1} parent=1 // pred_check_branch
      %33 = sbr.rel (0) target = $region21
    $region20: #{copsl_forward.1} parent=1 // pred_region
      _
    $region21: #{copsl_forward.1} parent=1 // pred_fallthru
      _
    // Predicated region
    $region22: #{copsl_forward.1} parent=1 // pred_check
      _
    $region23: #{copsl_forward.1} parent=1 // pred_check_branch
      %35 = sbr.rel (0) target = $region25
    $region24: #{copsl_forward.1} parent=1 // pred_region
      %s37 = ssub.s32 4096, 4096
      %38 = vsyncadd [#allocation5], %s37
      %s39 = sshll.u32 [#allocation4], 4
      %s40 = int_to_ptr.vmem [resolvable:$true] %s39
      %45 = dma.hbm_to_vmem [thread:$0]  %s5, 4096, %s40, [#allocation5], 64, 64, 4
    $region25: #{copsl_forward.1} parent=1 // pred_fallthru
      _
    // Predicated region
    $region26: #{copsl_forward.1} parent=1 // pred_check
      _
    $region27: #{copsl_forward.1} parent=1 // pred_check_branch
      %47 = sbr.rel (0) target = $region29
    $region28: #{copsl_forward.1} parent=1 // pred_region
      _
    $region29: #{copsl_forward.1} parent=1 // pred_fallthru
      _
    // Predicated region
    $region30: #{copsl_forward.1} parent=1 // pred_check
      _
    $region31: #{copsl_forward.1} parent=1 // pred_check_branch
      %49 = sbr.rel (0) target = $region33
    $region32: #{copsl_forward.1} parent=1 // pred_region
      %50 = dma.done [#allocation3], 8192
    $region33: #{copsl_forward.1} parent=1 // pred_fallthru
      _
    // Predicated region
    $region34: #{copsl_forward.1} parent=1 // pred_check
      _
    $region35: #{copsl_forward.1} parent=1 // pred_check_branch
      %52 = sbr.rel (0) target = $region37
    $region36: #{copsl_forward.1} parent=1 // pred_region
      %53 = dma.done [#allocation5], 4096
    $region37: #{copsl_forward.1} parent=1 // pred_fallthru
      _
    %v55 = vld [vmem:[%s0] sm:$0xff]
    %v56 = vpack.c.bf16 %v55, %v55
    %v57 = vld [vmem:[%s1] sm:$0xf]
    %v58 = vld [vmem:[%s2] sm:$0x3]
    %v60 = vlaneseq
    %v61 = vshrl.u32 %v60, 7
    %v62 = vsub.s32 0, %v61
    %v63 = vrot.slane %v58, %v62
    %v64 = vlaneseq
    %v65 = vshrl.u32 %v64, 7
    %v66 = vsub.s32 1, %v65
    %v67 = vrot.slane %v58, %v66
    %v72 = vunpack.c.l.s4 1983009808
    %v73 = vunpack.c.0.s8 %v72
    %v74 = vlaneseq
    %v75 = vshrl.u32 %v74, 7
    %v76 = vsub.s32 %v73, %v75
    %v77 = vrot.slane %v57, %v76
    %v78 = vcombine.high %v77, %v77
    %vm79 = vcmask 23552
    %v81 = vsel %vm79, %v56, 0
    %vm83 = vcmask 1040384
    %vm84 = vcmask 1041408
    %v85 = vsel %vm83, 4294967295, 65535
    %v86 = vsel %vm84, %v85, 0
    %v88 = vand.u32 %v77, %v86
    %v91 = vand.u32 %v78, %v86
    %93 = vmatprep.subr.bf16.mxu0 %v91
    %94 = vmatpush1.bf16.msra.mxu0 %v88
    %95 = vmatprep.subr.bf16.mxu0 0
    %96 = vmatpush1.bf16.msra.mxu0 0
    %97 = vmatprep.subr.bf16.mxu0 0
    %98 = vmatpush1.bf16.msra.mxu0 0
    %99 = vmatprep.subr.bf16.mxu0 0
    %100 = vmatpush1.bf16.msra.mxu0 0
    %101 = vmatprep.subr.bf16.mxu0 0
    %102 = vmatpush1.bf16.msra.mxu0 0
    %103 = vmatprep.subr.bf16.mxu0 0
    %104 = vmatpush1.bf16.msra.mxu0 0
    %105 = vmatprep.subr.bf16.mxu0 0
    %106 = vmatpush1.bf16.msra.mxu0 0
    %107 = vmatprep.subr.bf16.mxu0 0
    %108 = vmatpush1.bf16.msra.mxu0 0
    %109 = vmatprep.subr.bf16.mxu0 0
    %110 = vmatpush1.bf16.msra.mxu0 0
    %111 = vmatprep.subr.bf16.mxu0 0
    %112 = vmatpush1.bf16.msra.mxu0 0
    %113 = vmatprep.subr.bf16.mxu0 0
    %114 = vmatpush1.bf16.msra.mxu0 0
    %115 = vmatprep.subr.bf16.mxu0 0
    %116 = vmatpush1.bf16.msra.mxu0 0
    %117 = vmatprep.subr.bf16.mxu0 0
    %118 = vmatpush1.bf16.msra.mxu0 0
    %119 = vmatprep.subr.bf16.mxu0 0
    %120 = vmatpush1.bf16.msra.mxu0 0
    %121 = vmatprep.subr.bf16.mxu0 0
    %122 = vmatpush1.bf16.msra.mxu0 0
    %123 = vmatprep.subr.bf16.mxu0 0
    %124 = vmatpush1.bf16.msra.mxu0 0
    %125 = vmatprep.mubr.bf16.mxu0 0
    %126 = vmatmul.mubr.bf16.gmra.mrb[0].mxu0 %v81
    %v127 = vpop.f32.mrb[0].mxu0
    %v128 = vadd.f32 %v63, %v127
    %v129 = vpop.f32.mrb[0].mxu0
    %v130 = vadd.f32 %v67, %v129
    %v131 = vpop.f32.mrb[0].mxu0
    %v132 = vpop.f32.mrb[0].mxu0
    %133 = vdwg.mxu0
    %v134 = vmax.f32 %v128, 0.0
    %v135 = vmax.f32 %v130, 0.0
    %v136 = vpack.c.bf16 %v134, %v134
    %v137 = vpack.c.bf16 %v135, %v135
    %v138 = vld [vmem:[#allocation2] sm:$0xff]
    %v139 = vld [vmem:[#allocation2 + $0x8] sm:$0xff]
    %v140 = vld [vmem:[#allocation2 + $0x10] sm:$0xff]
    %v141 = vld [vmem:[#allocation2 + $0x18] sm:$0xff]
    %v142 = vld [vmem:[#allocation2 + $0x20] sm:$0xff]
    %v143 = vld [vmem:[#allocation2 + $0x28] sm:$0xff]
    %v144 = vld [vmem:[#allocation2 + $0x30] sm:$0xff]
    %v145 = vld [vmem:[#allocation2 + $0x38] sm:$0xff]
    %v146 = vld [vmem:[#allocation2 + $0x40] sm:$0xff]
    %v147 = vld [vmem:[#allocation2 + $0x48] sm:$0xff]
    %v148 = vld [vmem:[#allocation2 + $0x50] sm:$0xff]
    %v149 = vld [vmem:[#allocation2 + $0x58] sm:$0xff]
    %v150 = vld [vmem:[#allocation2 + $0x60] sm:$0xff]
    %v151 = vld [vmem:[#allocation2 + $0x68] sm:$0xff]
    %v152 = vld [vmem:[#allocation2 + $0x70] sm:$0xff]
    %v153 = vld [vmem:[#allocation2 + $0x78] sm:$0xff]
    %v154 = vld [vmem:[#allocation2 + $0x80] sm:$0xff]
    %v155 = vld [vmem:[#allocation2 + $0x88] sm:$0xff]
    %v156 = vld [vmem:[#allocation2 + $0x90] sm:$0xff]
    %v157 = vld [vmem:[#allocation2 + $0x98] sm:$0xff]
    %v158 = vld [vmem:[#allocation2 + $0xa0] sm:$0xff]
    %v159 = vld [vmem:[#allocation2 + $0xa8] sm:$0xff]
    %v160 = vld [vmem:[#allocation2 + $0xb0] sm:$0xff]
    %v161 = vld [vmem:[#allocation2 + $0xb8] sm:$0xff]
    %v162 = vld [vmem:[#allocation2 + $0xc0] sm:$0xff]
    %v163 = vld [vmem:[#allocation2 + $0xc8] sm:$0xff]
    %v164 = vld [vmem:[#allocation2 + $0xd0] sm:$0xff]
    %v165 = vld [vmem:[#allocation2 + $0xd8] sm:$0xff]
    %v166 = vld [vmem:[#allocation2 + $0xe0] sm:$0xff]
    %v167 = vld [vmem:[#allocation2 + $0xe8] sm:$0xff]
    %v168 = vld [vmem:[#allocation2 + $0xf0] sm:$0xff]
    %v169 = vld [vmem:[#allocation2 + $0xf8] sm:$0xff]
    %v170 = vld [vmem:[#allocation2 + $0x100] sm:$0xff]
    %v171 = vld [vmem:[#allocation2 + $0x108] sm:$0xff]
    %v172 = vld [vmem:[#allocation2 + $0x110] sm:$0xff]
    %v173 = vld [vmem:[#allocation2 + $0x118] sm:$0xff]
    %v174 = vld [vmem:[#allocation2 + $0x120] sm:$0xff]
    %v175 = vld [vmem:[#allocation2 + $0x128] sm:$0xff]
    %v176 = vld [vmem:[#allocation2 + $0x130] sm:$0xff]
    %v177 = vld [vmem:[#allocation2 + $0x138] sm:$0xff]
    %v178 = vld [vmem:[#allocation2 + $0x140] sm:$0xff]
    %v179 = vld [vmem:[#allocation2 + $0x148] sm:$0xff]
    %v180 = vld [vmem:[#allocation2 + $0x150] sm:$0xff]
    %v181 = vld [vmem:[#allocation2 + $0x158] sm:$0xff]
    %v182 = vld [vmem:[#allocation2 + $0x160] sm:$0xff]
    %v183 = vld [vmem:[#allocation2 + $0x168] sm:$0xff]
    %v184 = vld [vmem:[#allocation2 + $0x170] sm:$0xff]
    %v185 = vld [vmem:[#allocation2 + $0x178] sm:$0xff]
    %v186 = vld [vmem:[#allocation2 + $0x180] sm:$0xff]
    %v187 = vld [vmem:[#allocation2 + $0x188] sm:$0xff]
    %v188 = vld [vmem:[#allocation2 + $0x190] sm:$0xff]
    %v189 = vld [vmem:[#allocation2 + $0x198] sm:$0xff]
    %v190 = vld [vmem:[#allocation2 + $0x1a0] sm:$0xff]
    %v191 = vld [vmem:[#allocation2 + $0x1a8] sm:$0xff]
    %v192 = vld [vmem:[#allocation2 + $0x1b0] sm:$0xff]
    %v193 = vld [vmem:[#allocation2 + $0x1b8] sm:$0xff]
    %v194 = vld [vmem:[#allocation2 + $0x1c0] sm:$0xff]
    %v195 = vld [vmem:[#allocation2 + $0x1c8] sm:$0xff]
    %v196 = vld [vmem:[#allocation2 + $0x1d0] sm:$0xff]
    %v197 = vld [vmem:[#allocation2 + $0x1d8] sm:$0xff]
    %v198 = vld [vmem:[#allocation2 + $0x1e0] sm:$0xff]
    %v199 = vld [vmem:[#allocation2 + $0x1e8] sm:$0xff]
    %v200 = vld [vmem:[#allocation2 + $0x1f0] sm:$0xff]
    %v201 = vld [vmem:[#allocation2 + $0x1f8] sm:$0xff]
    %v202 = vld [vmem:[%s4] sm:$0xf]
    %v204 = vlaneseq
    %v205 = vshrl.u32 %v204, 7
    %v206 = vsub.s32 0, %v205
    %v207 = vrot.slane %v202, %v206
    %v208 = vlaneseq
    %v209 = vshrl.u32 %v208, 7
    %v210 = vsub.s32 1, %v209
    %v211 = vrot.slane %v202, %v210
    %v212 = vlaneseq
    %v213 = vshrl.u32 %v212, 7
    %v214 = vsub.s32 2, %v213
    %v215 = vrot.slane %v202, %v214
    %v216 = vlaneseq
    %v217 = vshrl.u32 %v216, 7
    %v218 = vsub.s32 3, %v217
    %v219 = vrot.slane %v202, %v218
    %v288 = vunpack.c.l.b16 %v138
    %v289 = vunpack.c.h.b16 %v138
    %v290 = vunpack.c.l.b16 %v139
    %v291 = vunpack.c.h.b16 %v139
    %v292 = vunpack.c.l.b16 %v140
    %v293 = vunpack.c.h.b16 %v140
    %v294 = vunpack.c.l.b16 %v141
    %v295 = vunpack.c.h.b16 %v141
    %v296 = vunpack.c.l.b16 %v142
    %v297 = vunpack.c.h.b16 %v142
    %v298 = vunpack.c.l.b16 %v143
    %v299 = vunpack.c.h.b16 %v143
    %v300 = vunpack.c.l.b16 %v144
    %v301 = vunpack.c.h.b16 %v144
    %v302 = vunpack.c.l.b16 %v145
    %v303 = vunpack.c.h.b16 %v145
    %v304 = vunpack.c.l.b16 %v146
    %v305 = vunpack.c.h.b16 %v146
    %v306 = vunpack.c.l.b16 %v147
    %v307 = vunpack.c.h.b16 %v147
    %v308 = vunpack.c.l.b16 %v148
    %v309 = vunpack.c.h.b16 %v148
    %v310 = vunpack.c.l.b16 %v149
    %v311 = vunpack.c.h.b16 %v149
    %v312 = vunpack.c.l.b16 %v150
    %v313 = vunpack.c.h.b16 %v150
    %v314 = vunpack.c.l.b16 %v151
    %v315 = vunpack.c.h.b16 %v151
    %v316 = vunpack.c.l.b16 %v152
    %v317 = vunpack.c.h.b16 %v152
    %v318 = vunpack.c.l.b16 %v153
    %v319 = vunpack.c.h.b16 %v153
    %v320 = vunpack.c.l.b16 %v154
    %v321 = vunpack.c.h.b16 %v154
    %v322 = vunpack.c.l.b16 %v155
    %v323 = vunpack.c.h.b16 %v155
    %v324 = vunpack.c.l.b16 %v156
    %v325 = vunpack.c.h.b16 %v156
    %v326 = vunpack.c.l.b16 %v157
    %v327 = vunpack.c.h.b16 %v157
    %v328 = vunpack.c.l.b16 %v158
    %v329 = vunpack.c.h.b16 %v158
    %v330 = vunpack.c.l.b16 %v159
    %v331 = vunpack.c.h.b16 %v159
    %v332 = vunpack.c.l.b16 %v160
    %v333 = vunpack.c.h.b16 %v160
    %v334 = vunpack.c.l.b16 %v161
    %v335 = vunpack.c.h.b16 %v161
    %v336 = vunpack.c.l.b16 %v162
    %v337 = vunpack.c.h.b16 %v162
    %v338 = vunpack.c.l.b16 %v163
    %v339 = vunpack.c.h.b16 %v163
    %v340 = vunpack.c.l.b16 %v164
    %v341 = vunpack.c.h.b16 %v164
    %v342 = vunpack.c.l.b16 %v165
    %v343 = vunpack.c.h.b16 %v165
    %v344 = vunpack.c.l.b16 %v166
    %v345 = vunpack.c.h.b16 %v166
    %v346 = vunpack.c.l.b16 %v167
    %v347 = vunpack.c.h.b16 %v167
    %v348 = vunpack.c.l.b16 %v168
    %v349 = vunpack.c.h.b16 %v168
    %v350 = vunpack.c.l.b16 %v169
    %v351 = vunpack.c.h.b16 %v169
    %v352 = vunpack.c.l.b16 %v170
    %v353 = vunpack.c.h.b16 %v170
    %v354 = vunpack.c.l.b16 %v171
    %v355 = vunpack.c.h.b16 %v171
    %v356 = vunpack.c.l.b16 %v172
    %v357 = vunpack.c.h.b16 %v172
    %v358 = vunpack.c.l.b16 %v173
    %v359 = vunpack.c.h.b16 %v173
    %v360 = vunpack.c.l.b16 %v174
    %v361 = vunpack.c.h.b16 %v174
    %v362 = vunpack.c.l.b16 %v175
    %v363 = vunpack.c.h.b16 %v175
    %v364 = vunpack.c.l.b16 %v176
    %v365 = vunpack.c.h.b16 %v176
    %v366 = vunpack.c.l.b16 %v177
    %v367 = vunpack.c.h.b16 %v177
    %v368 = vunpack.c.l.b16 %v178
    %v369 = vunpack.c.h.b16 %v178
    %v370 = vunpack.c.l.b16 %v179
    %v371 = vunpack.c.h.b16 %v179
    %v372 = vunpack.c.l.b16 %v180
    %v373 = vunpack.c.h.b16 %v180
    %v374 = vunpack.c.l.b16 %v181
    %v375 = vunpack.c.h.b16 %v181
    %v376 = vunpack.c.l.b16 %v182
    %v377 = vunpack.c.h.b16 %v182
    %v378 = vunpack.c.l.b16 %v183
    %v379 = vunpack.c.h.b16 %v183
    %v380 = vunpack.c.l.b16 %v184
    %v381 = vunpack.c.h.b16 %v184
    %v382 = vunpack.c.l.b16 %v185
    %v383 = vunpack.c.h.b16 %v185
    %v384 = vunpack.c.l.b16 %v186
    %v385 = vunpack.c.h.b16 %v186
    %v386 = vunpack.c.l.b16 %v187
    %v387 = vunpack.c.h.b16 %v187
    %v388 = vunpack.c.l.b16 %v188
    %v389 = vunpack.c.h.b16 %v188
    %v390 = vunpack.c.l.b16 %v189
    %v391 = vunpack.c.h.b16 %v189
    %v392 = vunpack.c.l.b16 %v190
    %v393 = vunpack.c.h.b16 %v190
    %v394 = vunpack.c.l.b16 %v191
    %v395 = vunpack.c.h.b16 %v191
    %v396 = vunpack.c.l.b16 %v192
    %v397 = vunpack.c.h.b16 %v192
    %v398 = vunpack.c.l.b16 %v193
    %v399 = vunpack.c.h.b16 %v193
    %v400 = vunpack.c.l.b16 %v194
    %v401 = vunpack.c.h.b16 %v194
    %v402 = vunpack.c.l.b16 %v195
    %v403 = vunpack.c.h.b16 %v195
    %v404 = vunpack.c.l.b16 %v196
    %v405 = vunpack.c.h.b16 %v196
    %v406 = vunpack.c.l.b16 %v197
    %v407 = vunpack.c.h.b16 %v197
    %v408 = vunpack.c.l.b16 %v198
    %v409 = vunpack.c.h.b16 %v198
    %v410 = vunpack.c.l.b16 %v199
    %v411 = vunpack.c.h.b16 %v199
    %v412 = vunpack.c.l.b16 %v200
    %v413 = vunpack.c.h.b16 %v200
    %v414 = vunpack.c.l.b16 %v201
    %v415 = vunpack.c.h.b16 %v201
    %v416 = vpack.c.b16 %v292, %v288
    %v417 = vpack.c.b16 %v293, %v289
    %v418 = vpack.c.b16 %v294, %v290
    %v419 = vpack.c.b16 %v295, %v291
    %v420 = vpack.c.b16 %v300, %v296
    %v421 = vpack.c.b16 %v301, %v297
    %v422 = vpack.c.b16 %v302, %v298
    %v423 = vpack.c.b16 %v303, %v299
    %v424 = vpack.c.b16 %v308, %v304
    %v425 = vpack.c.b16 %v309, %v305
    %v426 = vpack.c.b16 %v310, %v306
    %v427 = vpack.c.b16 %v311, %v307
    %v428 = vpack.c.b16 %v316, %v312
    %v429 = vpack.c.b16 %v317, %v313
    %v430 = vpack.c.b16 %v318, %v314
    %v431 = vpack.c.b16 %v319, %v315
    %v432 = vpack.c.b16 %v324, %v320
    %v433 = vpack.c.b16 %v325, %v321
    %v434 = vpack.c.b16 %v326, %v322
    %v435 = vpack.c.b16 %v327, %v323
    %v436 = vpack.c.b16 %v332, %v328
    %v437 = vpack.c.b16 %v333, %v329
    %v438 = vpack.c.b16 %v334, %v330
    %v439 = vpack.c.b16 %v335, %v331
    %v440 = vpack.c.b16 %v340, %v336
    %v441 = vpack.c.b16 %v341, %v337
    %v442 = vpack.c.b16 %v342, %v338
    %v443 = vpack.c.b16 %v343, %v339
    %v444 = vpack.c.b16 %v348, %v344
    %v445 = vpack.c.b16 %v349, %v345
    %v446 = vpack.c.b16 %v350, %v346
    %v447 = vpack.c.b16 %v351, %v347
    %v448 = vpack.c.b16 %v356, %v352
    %v449 = vpack.c.b16 %v357, %v353
    %v450 = vpack.c.b16 %v358, %v354
    %v451 = vpack.c.b16 %v359, %v355
    %v452 = vpack.c.b16 %v364, %v360
    %v453 = vpack.c.b16 %v365, %v361
    %v454 = vpack.c.b16 %v366, %v362
    %v455 = vpack.c.b16 %v367, %v363
    %v456 = vpack.c.b16 %v372, %v368
    %v457 = vpack.c.b16 %v373, %v369
    %v458 = vpack.c.b16 %v374, %v370
    %v459 = vpack.c.b16 %v375, %v371
    %v460 = vpack.c.b16 %v380, %v376
    %v461 = vpack.c.b16 %v381, %v377
    %v462 = vpack.c.b16 %v382, %v378
    %v463 = vpack.c.b16 %v383, %v379
    %v464 = vpack.c.b16 %v388, %v384
    %v465 = vpack.c.b16 %v389, %v385
    %v466 = vpack.c.b16 %v390, %v386
    %v467 = vpack.c.b16 %v391, %v387
    %v468 = vpack.c.b16 %v396, %v392
    %v469 = vpack.c.b16 %v397, %v393
    %v470 = vpack.c.b16 %v398, %v394
    %v471 = vpack.c.b16 %v399, %v395
    %v472 = vpack.c.b16 %v404, %v400
    %v473 = vpack.c.b16 %v405, %v401
    %v474 = vpack.c.b16 %v406, %v402
    %v475 = vpack.c.b16 %v407, %v403
    %v476 = vpack.c.b16 %v412, %v408
    %v477 = vpack.c.b16 %v413, %v409
    %v478 = vpack.c.b16 %v414, %v410
    %v479 = vpack.c.b16 %v415, %v411
    %544 = vmatprep.subr.bf16.mxu0 %v417
    %545 = vmatpush1.bf16.msra.mxu0 %v416
    %546 = vmatprep.subr.bf16.mxu0 %v421
    %547 = vmatpush1.bf16.msra.mxu0 %v420
    %548 = vmatprep.subr.bf16.mxu0 %v425
    %549 = vmatpush1.bf16.msra.mxu0 %v424
    %550 = vmatprep.subr.bf16.mxu0 %v429
    %551 = vmatpush1.bf16.msra.mxu0 %v428
    %552 = vmatprep.subr.bf16.mxu0 %v433
    %553 = vmatpush1.bf16.msra.mxu0 %v432
    %554 = vmatprep.subr.bf16.mxu0 %v437
    %555 = vmatpush1.bf16.msra.mxu0 %v436
    %556 = vmatprep.subr.bf16.mxu0 %v441
    %557 = vmatpush1.bf16.msra.mxu0 %v440
    %558 = vmatprep.subr.bf16.mxu0 %v445
    %559 = vmatpush1.bf16.msra.mxu0 %v444
    %560 = vmatprep.subr.bf16.mxu0 %v449
    %561 = vmatpush1.bf16.msra.mxu0 %v448
    %562 = vmatprep.subr.bf16.mxu0 %v453
    %563 = vmatpush1.bf16.msra.mxu0 %v452
    %564 = vmatprep.subr.bf16.mxu0 %v457
    %565 = vmatpush1.bf16.msra.mxu0 %v456
    %566 = vmatprep.subr.bf16.mxu0 %v461
    %567 = vmatpush1.bf16.msra.mxu0 %v460
    %568 = vmatprep.subr.bf16.mxu0 %v465
    %569 = vmatpush1.bf16.msra.mxu0 %v464
    %570 = vmatprep.subr.bf16.mxu0 %v469
    %571 = vmatpush1.bf16.msra.mxu0 %v468
    %572 = vmatprep.subr.bf16.mxu0 %v473
    %573 = vmatpush1.bf16.msra.mxu0 %v472
    %574 = vmatprep.subr.bf16.mxu0 %v477
    %575 = vmatpush1.bf16.msra.mxu0 %v476
    %576 = vmatprep.mubr.bf16.mxu0 %v137
    %577 = vmatmul.mubr.bf16.gmra.mrb[0].mxu0 %v136
    %v578 = vpop.f32.mrb[0].mxu0
    %v579 = vadd.f32 %v207, %v578
    %v580 = vpop.f32.mrb[0].mxu0
    %v581 = vadd.f32 %v211, %v580
    %v582 = vpop.f32.mrb[0].mxu0
    %v583 = vpop.f32.mrb[0].mxu0
    %584 = vdwg.mxu0
    %585 = vmatprep.subr.bf16.mxu0 %v419
    %586 = vmatpush1.bf16.msra.mxu0 %v418
    %587 = vmatprep.subr.bf16.mxu0 %v423
    %588 = vmatpush1.bf16.msra.mxu0 %v422
    %589 = vmatprep.subr.bf16.mxu0 %v427
    %590 = vmatpush1.bf16.msra.mxu0 %v426
    %591 = vmatprep.subr.bf16.mxu0 %v431
    %592 = vmatpush1.bf16.msra.mxu0 %v430
    %593 = vmatprep.subr.bf16.mxu0 %v435
    %594 = vmatpush1.bf16.msra.mxu0 %v434
    %595 = vmatprep.subr.bf16.mxu0 %v439
    %596 = vmatpush1.bf16.msra.mxu0 %v438
    %597 = vmatprep.subr.bf16.mxu0 %v443
    %598 = vmatpush1.bf16.msra.mxu0 %v442
    %599 = vmatprep.subr.bf16.mxu0 %v447
    %600 = vmatpush1.bf16.msra.mxu0 %v446
    %601 = vmatprep.subr.bf16.mxu0 %v451
    %602 = vmatpush1.bf16.msra.mxu0 %v450
    %603 = vmatprep.subr.bf16.mxu0 %v455
    %604 = vmatpush1.bf16.msra.mxu0 %v454
    %605 = vmatprep.subr.bf16.mxu0 %v459
    %606 = vmatpush1.bf16.msra.mxu0 %v458
    %607 = vmatprep.subr.bf16.mxu0 %v463
    %608 = vmatpush1.bf16.msra.mxu0 %v462
    %609 = vmatprep.subr.bf16.mxu0 %v467
    %610 = vmatpush1.bf16.msra.mxu0 %v466
    %611 = vmatprep.subr.bf16.mxu0 %v471
    %612 = vmatpush1.bf16.msra.mxu0 %v470
    %613 = vmatprep.subr.bf16.mxu0 %v475
    %614 = vmatpush1.bf16.msra.mxu0 %v474
    %615 = vmatprep.subr.bf16.mxu0 %v479
    %616 = vmatpush1.bf16.msra.mxu0 %v478
    %617 = vmatprep.mubr.bf16.mxu0 %v137
    %618 = vmatmul.mubr.bf16.gmra.mrb[0].mxu0 %v136
    %v619 = vpop.f32.mrb[0].mxu0
    %v620 = vadd.f32 %v215, %v619
    %v621 = vpop.f32.mrb[0].mxu0
    %v622 = vadd.f32 %v219, %v621
    %v623 = vpop.f32.mrb[0].mxu0
    %v624 = vpop.f32.mrb[0].mxu0
    %625 = vdwg.mxu0
    %v626 = vmax.f32 %v579, 0.0
    %v627 = vmax.f32 %v581, 0.0
    %v628 = vmax.f32 %v620, 0.0
    %v629 = vmax.f32 %v622, 0.0
    %v630 = vpack.c.bf16 %v626, %v626
    %v631 = vpack.c.bf16 %v627, %v627
    %v632 = vpack.c.bf16 %v628, %v628
    %v633 = vpack.c.bf16 %v629, %v629
    %v634 = vld [vmem:[#allocation4] sm:$0xf]
    %v635 = vld [vmem:[#allocation4 + $0x4] sm:$0xf]
    %v636 = vld [vmem:[#allocation4 + $0x8] sm:$0xf]
    %v637 = vld [vmem:[#allocation4 + $0xc] sm:$0xf]
    %v638 = vld [vmem:[#allocation4 + $0x10] sm:$0xf]
    %v639 = vld [vmem:[#allocation4 + $0x14] sm:$0xf]
    %v640 = vld [vmem:[#allocation4 + $0x18] sm:$0xf]
    %v641 = vld [vmem:[#allocation4 + $0x1c] sm:$0xf]
    %v642 = vld [vmem:[#allocation4 + $0x20] sm:$0xf]
    %v643 = vld [vmem:[#allocation4 + $0x24] sm:$0xf]
    %v644 = vld [vmem:[#allocation4 + $0x28] sm:$0xf]
    %v645 = vld [vmem:[#allocation4 + $0x2c] sm:$0xf]
    %v646 = vld [vmem:[#allocation4 + $0x30] sm:$0xf]
    %v647 = vld [vmem:[#allocation4 + $0x34] sm:$0xf]
    %v648 = vld [vmem:[#allocation4 + $0x38] sm:$0xf]
    %v649 = vld [vmem:[#allocation4 + $0x3c] sm:$0xf]
    %v650 = vld [vmem:[#allocation4 + $0x40] sm:$0xf]
    %v651 = vld [vmem:[#allocation4 + $0x44] sm:$0xf]
    %v652 = vld [vmem:[#allocation4 + $0x48] sm:$0xf]
    %v653 = vld [vmem:[#allocation4 + $0x4c] sm:$0xf]
    %v654 = vld [vmem:[#allocation4 + $0x50] sm:$0xf]
    %v655 = vld [vmem:[#allocation4 + $0x54] sm:$0xf]
    %v656 = vld [vmem:[#allocation4 + $0x58] sm:$0xf]
    %v657 = vld [vmem:[#allocation4 + $0x5c] sm:$0xf]
    %v658 = vld [vmem:[#allocation4 + $0x60] sm:$0xf]
    %v659 = vld [vmem:[#allocation4 + $0x64] sm:$0xf]
    %v660 = vld [vmem:[#allocation4 + $0x68] sm:$0xf]
    %v661 = vld [vmem:[#allocation4 + $0x6c] sm:$0xf]
    %v662 = vld [vmem:[#allocation4 + $0x70] sm:$0xf]
    %v663 = vld [vmem:[#allocation4 + $0x74] sm:$0xf]
    %v664 = vld [vmem:[#allocation4 + $0x78] sm:$0xf]
    %v665 = vld [vmem:[#allocation4 + $0x7c] sm:$0xf]
    %v666 = vld [vmem:[#allocation4 + $0x80] sm:$0xf]
    %v667 = vld [vmem:[#allocation4 + $0x84] sm:$0xf]
    %v668 = vld [vmem:[#allocation4 + $0x88] sm:$0xf]
    %v669 = vld [vmem:[#allocation4 + $0x8c] sm:$0xf]
    %v670 = vld [vmem:[#allocation4 + $0x90] sm:$0xf]
    %v671 = vld [vmem:[#allocation4 + $0x94] sm:$0xf]
    %v672 = vld [vmem:[#allocation4 + $0x98] sm:$0xf]
    %v673 = vld [vmem:[#allocation4 + $0x9c] sm:$0xf]
    %v674 = vld [vmem:[#allocation4 + $0xa0] sm:$0xf]
    %v675 = vld [vmem:[#allocation4 + $0xa4] sm:$0xf]
    %v676 = vld [vmem:[#allocation4 + $0xa8] sm:$0xf]
    %v677 = vld [vmem:[#allocation4 + $0xac] sm:$0xf]
    %v678 = vld [vmem:[#allocation4 + $0xb0] sm:$0xf]
    %v679 = vld [vmem:[#allocation4 + $0xb4] sm:$0xf]
    %v680 = vld [vmem:[#allocation4 + $0xb8] sm:$0xf]
    %v681 = vld [vmem:[#allocation4 + $0xbc] sm:$0xf]
    %v682 = vld [vmem:[#allocation4 + $0xc0] sm:$0xf]
    %v683 = vld [vmem:[#allocation4 + $0xc4] sm:$0xf]
    %v684 = vld [vmem:[#allocation4 + $0xc8] sm:$0xf]
    %v685 = vld [vmem:[#allocation4 + $0xcc] sm:$0xf]
    %v686 = vld [vmem:[#allocation4 + $0xd0] sm:$0xf]
    %v687 = vld [vmem:[#allocation4 + $0xd4] sm:$0xf]
    %v688 = vld [vmem:[#allocation4 + $0xd8] sm:$0xf]
    %v689 = vld [vmem:[#allocation4 + $0xdc] sm:$0xf]
    %v690 = vld [vmem:[#allocation4 + $0xe0] sm:$0xf]
    %v691 = vld [vmem:[#allocation4 + $0xe4] sm:$0xf]
    %v692 = vld [vmem:[#allocation4 + $0xe8] sm:$0xf]
    %v693 = vld [vmem:[#allocation4 + $0xec] sm:$0xf]
    %v694 = vld [vmem:[#allocation4 + $0xf0] sm:$0xf]
    %v695 = vld [vmem:[#allocation4 + $0xf4] sm:$0xf]
    %v696 = vld [vmem:[#allocation4 + $0xf8] sm:$0xf]
    %v697 = vld [vmem:[#allocation4 + $0xfc] sm:$0xf]
    %v698 = vld [vmem:[%s6] sm:$0x1]
    %v700 = vlaneseq
    %v701 = vshrl.u32 %v700, 7
    %v702 = vsub.s32 0, %v701
    %v703 = vrot.slane %v698, %v702
    %v769 = vunpack.c.l.b16 %v634
    %v770 = vunpack.c.l.b16 %v635
    %v771 = vunpack.c.l.b16 %v636
    %v772 = vunpack.c.l.b16 %v637
    %v773 = vunpack.c.l.b16 %v638
    %v774 = vunpack.c.l.b16 %v639
    %v775 = vunpack.c.l.b16 %v640
    %v776 = vunpack.c.l.b16 %v641
    %v777 = vunpack.c.l.b16 %v642
    %v778 = vunpack.c.l.b16 %v643
    %v779 = vunpack.c.l.b16 %v644
    %v780 = vunpack.c.l.b16 %v645
    %v781 = vunpack.c.l.b16 %v646
    %v782 = vunpack.c.l.b16 %v647
    %v783 = vunpack.c.l.b16 %v648
    %v784 = vunpack.c.l.b16 %v649
    %v785 = vunpack.c.l.b16 %v650
    %v786 = vunpack.c.l.b16 %v651
    %v787 = vunpack.c.l.b16 %v652
    %v788 = vunpack.c.l.b16 %v653
    %v789 = vunpack.c.l.b16 %v654
    %v790 = vunpack.c.l.b16 %v655
    %v791 = vunpack.c.l.b16 %v656
    %v792 = vunpack.c.l.b16 %v657
    %v793 = vunpack.c.l.b16 %v658
    %v794 = vunpack.c.l.b16 %v659
    %v795 = vunpack.c.l.b16 %v660
    %v796 = vunpack.c.l.b16 %v661
    %v797 = vunpack.c.l.b16 %v662
    %v798 = vunpack.c.l.b16 %v663
    %v799 = vunpack.c.l.b16 %v664
    %v800 = vunpack.c.l.b16 %v665
    %v801 = vunpack.c.l.b16 %v666
    %v802 = vunpack.c.l.b16 %v667
    %v803 = vunpack.c.l.b16 %v668
    %v804 = vunpack.c.l.b16 %v669
    %v805 = vunpack.c.l.b16 %v670
    %v806 = vunpack.c.l.b16 %v671
    %v807 = vunpack.c.l.b16 %v672
    %v808 = vunpack.c.l.b16 %v673
    %v809 = vunpack.c.l.b16 %v674
    %v810 = vunpack.c.l.b16 %v675
    %v811 = vunpack.c.l.b16 %v676
    %v812 = vunpack.c.l.b16 %v677
    %v813 = vunpack.c.l.b16 %v678
    %v814 = vunpack.c.l.b16 %v679
    %v815 = vunpack.c.l.b16 %v680
    %v816 = vunpack.c.l.b16 %v681
    %v817 = vunpack.c.l.b16 %v682
    %v818 = vunpack.c.l.b16 %v683
    %v819 = vunpack.c.l.b16 %v684
    %v820 = vunpack.c.l.b16 %v685
    %v821 = vunpack.c.l.b16 %v686
    %v822 = vunpack.c.l.b16 %v687
    %v823 = vunpack.c.l.b16 %v688
    %v824 = vunpack.c.l.b16 %v689
    %v825 = vunpack.c.l.b16 %v690
    %v826 = vunpack.c.l.b16 %v691
    %v827 = vunpack.c.l.b16 %v692
    %v828 = vunpack.c.l.b16 %v693
    %v829 = vunpack.c.l.b16 %v694
    %v830 = vunpack.c.l.b16 %v695
    %v831 = vunpack.c.l.b16 %v696
    %v832 = vunpack.c.l.b16 %v697
    %v833 = vpack.c.b16 %v770, %v769
    %v834 = vpack.c.b16 %v772, %v771
    %v835 = vpack.c.b16 %v774, %v773
    %v836 = vpack.c.b16 %v776, %v775
    %v837 = vpack.c.b16 %v778, %v777
    %v838 = vpack.c.b16 %v780, %v779
    %v839 = vpack.c.b16 %v782, %v781
    %v840 = vpack.c.b16 %v784, %v783
    %v841 = vpack.c.b16 %v786, %v785
    %v842 = vpack.c.b16 %v788, %v787
    %v843 = vpack.c.b16 %v790, %v789
    %v844 = vpack.c.b16 %v792, %v791
    %v845 = vpack.c.b16 %v794, %v793
    %v846 = vpack.c.b16 %v796, %v795
    %v847 = vpack.c.b16 %v798, %v797
    %v848 = vpack.c.b16 %v800, %v799
    %v849 = vpack.c.b16 %v802, %v801
    %v850 = vpack.c.b16 %v804, %v803
    %v851 = vpack.c.b16 %v806, %v805
    %v852 = vpack.c.b16 %v808, %v807
    %v853 = vpack.c.b16 %v810, %v809
    %v854 = vpack.c.b16 %v812, %v811
    %v855 = vpack.c.b16 %v814, %v813
    %v856 = vpack.c.b16 %v816, %v815
    %v857 = vpack.c.b16 %v818, %v817
    %v858 = vpack.c.b16 %v820, %v819
    %v859 = vpack.c.b16 %v822, %v821
    %v860 = vpack.c.b16 %v824, %v823
    %v861 = vpack.c.b16 %v826, %v825
    %v862 = vpack.c.b16 %v828, %v827
    %v863 = vpack.c.b16 %v830, %v829
    %v864 = vpack.c.b16 %v832, %v831
    %897 = vmatprep.subr.bf16.mxu0 0
    %898 = vmatpush1.bf16.msra.mxu0 %v833
    %899 = vmatprep.subr.bf16.mxu0 0
    %900 = vmatpush1.bf16.msra.mxu0 %v834
    %901 = vmatprep.subr.bf16.mxu0 0
    %902 = vmatpush1.bf16.msra.mxu0 %v835
    %903 = vmatprep.subr.bf16.mxu0 0
    %904 = vmatpush1.bf16.msra.mxu0 %v836
    %905 = vmatprep.subr.bf16.mxu0 0
    %906 = vmatpush1.bf16.msra.mxu0 %v837
    %907 = vmatprep.subr.bf16.mxu0 0
    %908 = vmatpush1.bf16.msra.mxu0 %v838
    %909 = vmatprep.subr.bf16.mxu0 0
    %910 = vmatpush1.bf16.msra.mxu0 %v839
    %911 = vmatprep.subr.bf16.mxu0 0
    %912 = vmatpush1.bf16.msra.mxu0 %v840
    %913 = vmatprep.subr.bf16.mxu0 0
    %914 = vmatpush1.bf16.msra.mxu0 %v841
    %915 = vmatprep.subr.bf16.mxu0 0
    %916 = vmatpush1.bf16.msra.mxu0 %v842
    %917 = vmatprep.subr.bf16.mxu0 0
    %918 = vmatpush1.bf16.msra.mxu0 %v843
    %919 = vmatprep.subr.bf16.mxu0 0
    %920 = vmatpush1.bf16.msra.mxu0 %v844
    %921 = vmatprep.subr.bf16.mxu0 0
    %922 = vmatpush1.bf16.msra.mxu0 %v845
    %923 = vmatprep.subr.bf16.mxu0 0
    %924 = vmatpush1.bf16.msra.mxu0 %v846
    %925 = vmatprep.subr.bf16.mxu0 0
    %926 = vmatpush1.bf16.msra.mxu0 %v847
    %927 = vmatprep.subr.bf16.mxu0 0
    %928 = vmatpush1.bf16.msra.mxu0 %v848
    %929 = vmatprep.mubr.bf16.mxu0 %v631
    %930 = vmatmul.mubr.bf16.gmra.mrb[0].mxu0 %v630
    %v931 = vpop.f32.mrb[0].mxu0
    %v932 = vadd.f32 %v703, %v931
    %v933 = vpop.f32.mrb[0].mxu0
    %v934 = vpop.f32.mrb[0].mxu0
    %v935 = vpop.f32.mrb[0].mxu0
    %936 = vdwg.mxu0
    %937 = vmatprep.subr.bf16.mxu0 0
    %938 = vmatpush1.bf16.msra.mxu0 %v849
    %939 = vmatprep.subr.bf16.mxu0 0
    %940 = vmatpush1.bf16.msra.mxu0 %v850
    %941 = vmatprep.subr.bf16.mxu0 0
    %942 = vmatpush1.bf16.msra.mxu0 %v851
    %943 = vmatprep.subr.bf16.mxu0 0
    %944 = vmatpush1.bf16.msra.mxu0 %v852
    %945 = vmatprep.subr.bf16.mxu0 0
    %946 = vmatpush1.bf16.msra.mxu0 %v853
    %947 = vmatprep.subr.bf16.mxu0 0
    %948 = vmatpush1.bf16.msra.mxu0 %v854
    %949 = vmatprep.subr.bf16.mxu0 0
    %950 = vmatpush1.bf16.msra.mxu0 %v855
    %951 = vmatprep.subr.bf16.mxu0 0
    %952 = vmatpush1.bf16.msra.mxu0 %v856
    %953 = vmatprep.subr.bf16.mxu0 0
    %954 = vmatpush1.bf16.msra.mxu0 %v857
    %955 = vmatprep.subr.bf16.mxu0 0
    %956 = vmatpush1.bf16.msra.mxu0 %v858
    %957 = vmatprep.subr.bf16.mxu0 0
    %958 = vmatpush1.bf16.msra.mxu0 %v859
    %959 = vmatprep.subr.bf16.mxu0 0
    %960 = vmatpush1.bf16.msra.mxu0 %v860
    %961 = vmatprep.subr.bf16.mxu0 0
    %962 = vmatpush1.bf16.msra.mxu0 %v861
    %963 = vmatprep.subr.bf16.mxu0 0
    %964 = vmatpush1.bf16.msra.mxu0 %v862
    %965 = vmatprep.subr.bf16.mxu0 0
    %966 = vmatpush1.bf16.msra.mxu0 %v863
    %967 = vmatprep.subr.bf16.mxu0 0
    %968 = vmatpush1.bf16.msra.mxu0 %v864
    %969 = vmatprep.mubr.bf16.mxu0 %v633
    %970 = vmatmul.mubr.bf16.gmra.mrb[0].mxu0 %v632
    %v971 = vpop.f32.mrb[0].mxu0
    %v972 = vadd.f32 %v932, %v971
    %v973 = vpop.f32.mrb[0].mxu0
    %v974 = vpop.f32.mrb[0].mxu0
    %v975 = vpop.f32.mrb[0].mxu0
    %976 = vdwg.mxu0
    %v977 = vxor.u32 %v972, 2147483648
    %v978 = vmul.f32 %v977, 1.442695
    %v979 = vpow.pop %v978
    %v980 = vadd.f32 %v979, 1.0
    %v981 = vrcp.pop %v980
    %v982 = vmul.f32 1.0, %v981
    %983 = vst [vmem:[%s7] sm:$0xff] %v982
    // Predicated region
    $region38: #{copsl_forward.1} parent=1 // pred_check
      _
    $region39: #{copsl_forward.1} parent=1 // pred_check_branch
      %985 = sbr.rel (0) target = $region41
    $region40: #{copsl_forward.1} parent=1 // pred_region
      _
    $region41: #{copsl_forward.1} parent=1 // pred_fallthru
      _
    // Predicated region
    $region42: #{copsl_forward.1} parent=1 // pred_check
      _
    $region43: #{copsl_forward.1} parent=1 // pred_check_branch
      %987 = sbr.rel (0) target = $region45
    $region44: #{copsl_forward.1} parent=1 // pred_region
      _
    $region45: #{copsl_forward.1} parent=1 // pred_fallthru
      _
    %988 = vsyncpa [#allocation3], 1
    %989 = vsyncpa [#allocation5], 1

// kernel: copsl_forward.1
$region0: #{copsl_forward.1}
  #allocation0 [shape = 'u32[]', space=smem, size = 0x4, offset = 0x4, fixed_abs, tag = 'smem constant byte address 0x4 - core index']
  #allocation1 [shape = 'u32[144,128]{1,0:T(1,128)}', space=vmem, size = 0x12000, scoped, tag = 'internal scratch']
  %s0 = inlined_call_operand.vmem [shape: f32[8,3], index: 0, kind: input, shape index: {}]
  %s1 = inlined_call_operand.vmem [shape: bf16[3,256], index: 1, kind: input, shape index: {}]
  %s2 = inlined_call_operand.vmem [shape: f32[1,256], index: 2, kind: input, shape index: {}]
  %s3 = inlined_call_operand.hbm [shape: bf16[256,512], index: 3, kind: input, shape index: {}]
  %s4 = inlined_call_operand.vmem [shape: f32[1,512], index: 4, kind: input, shape index: {}]
  %s5 = inlined_call_operand.hbm [shape: bf16[512,128], index: 5, kind: input, shape index: {}]
  %s6 = inlined_call_operand.vmem [shape: f32[1,128], index: 6, kind: input, shape index: {}]
  %s7 = inlined_call_operand.vmem [shape: f32[8,128], index: 7, kind: output, shape index: {}]
  %s8 = sld [smem:[#allocation0]]
  $region46: #{copsl_forward.1} parent=0
    _
  %s10 = ssub.s32 1, %s8
  %s11 = scalar_select 0, %s10, %s8
  $region1: #{copsl_forward.1} parent=0
    #allocation2 [shape = 'u8[262144]{0}', space=vmem, size = 0x40000, scoped, tag = 'input window, operand 3, single buffered']
    #allocation3 [shape = 's32[1]{0}', space=sflag, size = 0x4, scoped, tag = 'scoped memory for copsl_forward.1']
    #allocation4 [shape = 'u8[131072]{0}', space=vmem, size = 0x20000, scoped, tag = 'input window, operand 5, single buffered']
    #allocation5 [shape = 's32[1]{0}', space=sflag, size = 0x4, scoped, tag = 'scoped memory for copsl_forward.1']
    %12 = vsyncpa [#allocation3], 0
    %13 = vsyncpa [#allocation5], 0
    // Predicated region
    $region2: #{copsl_forward.1} parent=1 // pred_check
      _
    $region3: #{copsl_forward.1} parent=1 // pred_check_branch
      %15 = sbr.rel (0) target = $region5
    $region4: #{copsl_forward.1} parent=1 // pred_region
      _
    $region5: #{copsl_forward.1} parent=1 // pred_fallthru
      _
    // Predicated region
    $region6: #{copsl_forward.1} parent=1 // pred_check
      _
    $region7: #{copsl_forward.1} parent=1 // pred_check_branch
      %17 = sbr.rel (0) target = $region9
    $region8: #{copsl_forward.1} parent=1 // pred_region
      _
    $region9: #{copsl_forward.1} parent=1 // pred_fallthru
      _
    // Predicated region
    $region10: #{copsl_forward.1} parent=1 // pred_check
      _
    $region11: #{copsl_forward.1} parent=1 // pred_check_branch
      %19 = sbr.rel (0) target = $region13
    $region12: #{copsl_forward.1} parent=1 // pred_region
      _
    $region13: #{copsl_forward.1} parent=1 // pred_fallthru
      _
    // Predicated region
    $region14: #{copsl_forward.1} parent=1 // pred_check
      _
    $region15: #{copsl_forward.1} parent=1 // pred_check_branch
      %21 = sbr.rel (0) target = $region17
    $region16: #{copsl_forward.1} parent=1 // pred_region
      %s23 = ssub.s32 8192, 8192
      %24 = vsyncadd [#allocation3], %s23
      %s25 = sshll.u32 [#allocation2], 4
      %s26 = int_to_ptr.vmem [resolvable:$true] %s25
      %31 = dma.hbm_to_vmem [thread:$0]  %s3, 8192, %s26, [#allocation3], 256, 256, 16
    $region17: #{copsl_forward.1} parent=1 // pred_fallthru
      _
    // Predicated region
    $region18: #{copsl_forward.1} parent=1 // pred_check
      _
    $region19: #{copsl_forward.1} parent=1 // pred_check_branch
      %33 = sbr.rel (0) target = $region21
    $region20: #{copsl_forward.1} parent=1 // pred_region
      _
    $region21: #{copsl_forward.1} parent=1 // pred_fallthru
      _
    // Predicated region
    $region22: #{copsl_forward.1} parent=1 // pred_check
      _
    $region23: #{copsl_forward.1} parent=1 // pred_check_branch
      %35 = sbr.rel (0) target = $region25
    $region24: #{copsl_forward.1} parent=1 // pred_region
      %s37 = ssub.s32 4096, 4096
      %38 = vsyncadd [#allocation5], %s37
      %s39 = sshll.u32 [#allocation4], 4
      %s40 = int_to_ptr.vmem [resolvable:$true] %s39
      %45 = dma.hbm_to_vmem [thread:$0]  %s5, 4096, %s40, [#allocation5], 64, 64, 4
    $region25: #{copsl_forward.1} parent=1 // pred_fallthru
      _
    // Predicated region
    $region26: #{copsl_forward.1} parent=1 // pred_check
      _
    $region27: #{copsl_forward.1} parent=1 // pred_check_branch
      %47 = sbr.rel (0) target = $region29
    $region28: #{copsl_forward.1} parent=1 // pred_region
      _
    $region29: #{copsl_forward.1} parent=1 // pred_fallthru
      _
    // Predicated region
    $region30: #{copsl_forward.1} parent=1 // pred_check
      _
    $region31: #{copsl_forward.1} parent=1 // pred_check_branch
      %49 = sbr.rel (0) target = $region33
    $region32: #{copsl_forward.1} parent=1 // pred_region
      %50 = dma.done [#allocation3], 8192
    $region33: #{copsl_forward.1} parent=1 // pred_fallthru
      _
    // Predicated region
    $region34: #{copsl_forward.1} parent=1 // pred_check
      _
    $region35: #{copsl_forward.1} parent=1 // pred_check_branch
      %52 = sbr.rel (0) target = $region37
    $region36: #{copsl_forward.1} parent=1 // pred_region
      %53 = dma.done [#allocation5], 4096
    $region37: #{copsl_forward.1} parent=1 // pred_fallthru
      _
    %v55 = vld [vmem:[%s0] sm:$0xff]
    %v56 = vpack.c.bf16 %v55, %v55
    %v57 = vld [vmem:[%s1] sm:$0xf]
    %v58 = vld [vmem:[%s2] sm:$0x3]
    %v60 = vlaneseq
    %v61 = vshrl.u32 %v60, 7
    %v62 = vsub.s32 0, %v61
    %v63 = vrot.slane %v58, %v62
    %v64 = vlaneseq
    %v65 = vshrl.u32 %v64, 7
    %v66 = vsub.s32 1, %v65
    %v67 = vrot.slane %v58, %v66
    %v72 = vunpack.c.l.s4 1983009808
    %v73 = vunpack.c.0.s8 %v72
    %v74 = vlaneseq
    %v75 = vshrl.u32 %v74, 7
    %v76 = vsub.s32 %v73, %v75
    %v77 = vrot.slane %v57, %v76
    %v78 = vcombine.high %v77, %v77
    %vm79 = vcmask 23552
    %v81 = vsel %vm79, %v56, 0
    %vm83 = vcmask 1040384
    %vm84 = vcmask 1041408
    %v85 = vsel %vm83, 4294967295, 65535
    %v86 = vsel %vm84, %v85, 0
    %v88 = vand.u32 %v77, %v86
    %v91 = vand.u32 %v78, %v86
    %93 = vmatprep.subr.bf16.mxu0 %v91
    %94 = vmatpush1.bf16.msra.mxu0 %v88
    %95 = vmatprep.subr.bf16.mxu0 0
    %96 = vmatpush1.bf16.msra.mxu0 0
    %97 = vmatprep.subr.bf16.mxu0 0
    %98 = vmatpush1.bf16.msra.mxu0 0
    %99 = vmatprep.subr.bf16.mxu0 0
    %100 = vmatpush1.bf16.msra.mxu0 0
    %101 = vmatprep.subr.bf16.mxu0 0
    %102 = vmatpush1.bf16.msra.mxu0 0
    %103 = vmatprep.subr.bf16.mxu0 0
    %104 = vmatpush1.bf16.msra.mxu0 0
    %105 = vmatprep.subr.bf16.mxu0 0
    %106 = vmatpush1.bf16.msra.mxu0 0
    %107 = vmatprep.subr.bf16.mxu0 0
    %108 = vmatpush1.bf16.msra.mxu0 0
    %109 = vmatprep.subr.bf16.mxu0 0
    %110 = vmatpush1.bf16.msra.mxu0 0
    %111 = vmatprep.subr.bf16.mxu0 0
    %112 = vmatpush1.bf16.msra.mxu0 0
    %113 = vmatprep.subr.bf16.mxu0 0
    %114 = vmatpush1.bf16.msra.mxu0 0
    %115 = vmatprep.subr.bf16.mxu0 0
    %116 = vmatpush1.bf16.msra.mxu0 0
    %117 = vmatprep.subr.bf16.mxu0 0
    %118 = vmatpush1.bf16.msra.mxu0 0
    %119 = vmatprep.subr.bf16.mxu0 0
    %120 = vmatpush1.bf16.msra.mxu0 0
    %121 = vmatprep.subr.bf16.mxu0 0
    %122 = vmatpush1.bf16.msra.mxu0 0
    %123 = vmatprep.subr.bf16.mxu0 0
    %124 = vmatpush1.bf16.msra.mxu0 0
    %125 = vmatprep.mubr.bf16.mxu0 0
    %126 = vmatmul.mubr.bf16.gmra.mrb[0].mxu0 %v81
    %v127 = vpop.f32.mrb[0].mxu0
    %v128 = vadd.f32 %v63, %v127
    %v129 = vpop.f32.mrb[0].mxu0
    %v130 = vadd.f32 %v67, %v129
    %v131 = vpop.f32.mrb[0].mxu0
    %v132 = vpop.f32.mrb[0].mxu0
    %133 = vdwg.mxu0
    %v134 = vmax.f32 %v128, 0.0
    %v135 = vmax.f32 %v130, 0.0
    %v136 = vpack.c.bf16 %v134, %v134
    %v137 = vpack.c.bf16 %v135, %v135
    %v138 = vld [vmem:[#allocation2] sm:$0xff]
    %v139 = vld [vmem:[#allocation2 + $0x8] sm:$0xff]
    %v140 = vld [vmem:[#allocation2 + $0x10] sm:$0xff]
    %v141 = vld [vmem:[#allocation2 + $0x18] sm:$0xff]
    %v142 = vld [vmem:[#allocation2 + $0x20] sm:$0xff]
    %v143 = vld [vmem:[#allocation2 + $0x28] sm:$0xff]
    %v144 = vld [vmem:[#allocation2 + $0x30] sm:$0xff]
    %v145 = vld [vmem:[#allocation2 + $0x38] sm:$0xff]
    %v146 = vld [vmem:[#allocation2 + $0x40] sm:$0xff]
    %v147 = vld [vmem:[#allocation2 + $0x48] sm:$0xff]
    %v148 = vld [vmem:[#allocation2 + $0x50] sm:$0xff]
    %v149 = vld [vmem:[#allocation2 + $0x58] sm:$0xff]
    %v150 = vld [vmem:[#allocation2 + $0x60] sm:$0xff]
    %v151 = vld [vmem:[#allocation2 + $0x68] sm:$0xff]
    %v152 = vld [vmem:[#allocation2 + $0x70] sm:$0xff]
    %v153 = vld [vmem:[#allocation2 + $0x78] sm:$0xff]
    %v154 = vld [vmem:[#allocation2 + $0x80] sm:$0xff]
    %v155 = vld [vmem:[#allocation2 + $0x88] sm:$0xff]
    %v156 = vld [vmem:[#allocation2 + $0x90] sm:$0xff]
    %v157 = vld [vmem:[#allocation2 + $0x98] sm:$0xff]
    %v158 = vld [vmem:[#allocation2 + $0xa0] sm:$0xff]
    %v159 = vld [vmem:[#allocation2 + $0xa8] sm:$0xff]
    %v160 = vld [vmem:[#allocation2 + $0xb0] sm:$0xff]
    %v161 = vld [vmem:[#allocation2 + $0xb8] sm:$0xff]
    %v162 = vld [vmem:[#allocation2 + $0xc0] sm:$0xff]
    %v163 = vld [vmem:[#allocation2 + $0xc8] sm:$0xff]
    %v164 = vld [vmem:[#allocation2 + $0xd0] sm:$0xff]
    %v165 = vld [vmem:[#allocation2 + $0xd8] sm:$0xff]
    %v166 = vld [vmem:[#allocation2 + $0xe0] sm:$0xff]
    %v167 = vld [vmem:[#allocation2 + $0xe8] sm:$0xff]
    %v168 = vld [vmem:[#allocation2 + $0xf0] sm:$0xff]
    %v169 = vld [vmem:[#allocation2 + $0xf8] sm:$0xff]
    %v170 = vld [vmem:[#allocation2 + $0x100] sm:$0xff]
    %v171 = vld [vmem:[#allocation2 + $0x108] sm:$0xff]
    %v172 = vld [vmem:[#allocation2 + $0x110] sm:$0xff]
    %v173 = vld [vmem:[#allocation2 + $0x118] sm:$0xff]
    %v174 = vld [vmem:[#allocation2 + $0x120] sm:$0xff]
    %v175 = vld [vmem:[#allocation2 + $0x128] sm:$0xff]
    %v176 = vld [vmem:[#allocation2 + $0x130] sm:$0xff]
    %v177 = vld [vmem:[#allocation2 + $0x138] sm:$0xff]
    %v178 = vld [vmem:[#allocation2 + $0x140] sm:$0xff]
    %v179 = vld [vmem:[#allocation2 + $0x148] sm:$0xff]
    %v180 = vld [vmem:[#allocation2 + $0x150] sm:$0xff]
    %v181 = vld [vmem:[#allocation2 + $0x158] sm:$0xff]
    %v182 = vld [vmem:[#allocation2 + $0x160] sm:$0xff]
    %v183 = vld [vmem:[#allocation2 + $0x168] sm:$0xff]
    %v184 = vld [vmem:[#allocation2 + $0x170] sm:$0xff]
    %v185 = vld [vmem:[#allocation2 + $0x178] sm:$0xff]
    %v186 = vld [vmem:[#allocation2 + $0x180] sm:$0xff]
    %v187 = vld [vmem:[#allocation2 + $0x188] sm:$0xff]
    %v188 = vld [vmem:[#allocation2 + $0x190] sm:$0xff]
    %v189 = vld [vmem:[#allocation2 + $0x198] sm:$0xff]
    %v190 = vld [vmem:[#allocation2 + $0x1a0] sm:$0xff]
    %v191 = vld [vmem:[#allocation2 + $0x1a8] sm:$0xff]
    %v192 = vld [vmem:[#allocation2 + $0x1b0] sm:$0xff]
    %v193 = vld [vmem:[#allocation2 + $0x1b8] sm:$0xff]
    %v194 = vld [vmem:[#allocation2 + $0x1c0] sm:$0xff]
    %v195 = vld [vmem:[#allocation2 + $0x1c8] sm:$0xff]
    %v196 = vld [vmem:[#allocation2 + $0x1d0] sm:$0xff]
    %v197 = vld [vmem:[#allocation2 + $0x1d8] sm:$0xff]
    %v198 = vld [vmem:[#allocation2 + $0x1e0] sm:$0xff]
    %v199 = vld [vmem:[#allocation2 + $0x1e8] sm:$0xff]
    %v200 = vld [vmem:[#allocation2 + $0x1f0] sm:$0xff]
    %v201 = vld [vmem:[#allocation2 + $0x1f8] sm:$0xff]
    %v202 = vld [vmem:[%s4] sm:$0xf]
    %v204 = vlaneseq
    %v205 = vshrl.u32 %v204, 7
    %v206 = vsub.s32 0, %v205
    %v207 = vrot.slane %v202, %v206
    %v208 = vlaneseq
    %v209 = vshrl.u32 %v208, 7
    %v210 = vsub.s32 1, %v209
    %v211 = vrot.slane %v202, %v210
    %v212 = vlaneseq
    %v213 = vshrl.u32 %v212, 7
    %v214 = vsub.s32 2, %v213
    %v215 = vrot.slane %v202, %v214
    %v216 = vlaneseq
    %v217 = vshrl.u32 %v216, 7
    %v218 = vsub.s32 3, %v217
    %v219 = vrot.slane %v202, %v218
    %v288 = vunpack.c.l.b16 %v138
    %v289 = vunpack.c.h.b16 %v138
    %v290 = vunpack.c.l.b16 %v139
    %v291 = vunpack.c.h.b16 %v139
    %v292 = vunpack.c.l.b16 %v140
    %v293 = vunpack.c.h.b16 %v140
    %v294 = vunpack.c.l.b16 %v141
    %v295 = vunpack.c.h.b16 %v141
    %v296 = vunpack.c.l.b16 %v142
    %v297 = vunpack.c.h.b16 %v142
    %v298 = vunpack.c.l.b16 %v143
    %v299 = vunpack.c.h.b16 %v143
    %v300 = vunpack.c.l.b16 %v144
    %v301 = vunpack.c.h.b16 %v144
    %v302 = vunpack.c.l.b16 %v145
    %v303 = vunpack.c.h.b16 %v145
    %v304 = vunpack.c.l.b16 %v146
    %v305 = vunpack.c.h.b16 %v146
    %v306 = vunpack.c.l.b16 %v147
    %v307 = vunpack.c.h.b16 %v147
    %v308 = vunpack.c.l.b16 %v148
    %v309 = vunpack.c.h.b16 %v148
    %v310 = vunpack.c.l.b16 %v149
    %v311 = vunpack.c.h.b16 %v149
    %v312 = vunpack.c.l.b16 %v150
    %v313 = vunpack.c.h.b16 %v150
    %v314 = vunpack.c.l.b16 %v151
    %v315 = vunpack.c.h.b16 %v151
    %v316 = vunpack.c.l.b16 %v152
    %v317 = vunpack.c.h.b16 %v152
    %v318 = vunpack.c.l.b16 %v153
    %v319 = vunpack.c.h.b16 %v153
    %v320 = vunpack.c.l.b16 %v154
    %v321 = vunpack.c.h.b16 %v154
    %v322 = vunpack.c.l.b16 %v155
    %v323 = vunpack.c.h.b16 %v155
    %v324 = vunpack.c.l.b16 %v156
    %v325 = vunpack.c.h.b16 %v156
    %v326 = vunpack.c.l.b16 %v157
    %v327 = vunpack.c.h.b16 %v157
    %v328 = vunpack.c.l.b16 %v158
    %v329 = vunpack.c.h.b16 %v158
    %v330 = vunpack.c.l.b16 %v159
    %v331 = vunpack.c.h.b16 %v159
    %v332 = vunpack.c.l.b16 %v160
    %v333 = vunpack.c.h.b16 %v160
    %v334 = vunpack.c.l.b16 %v161
    %v335 = vunpack.c.h.b16 %v161
    %v336 = vunpack.c.l.b16 %v162
    %v337 = vunpack.c.h.b16 %v162
    %v338 = vunpack.c.l.b16 %v163
    %v339 = vunpack.c.h.b16 %v163
    %v340 = vunpack.c.l.b16 %v164
    %v341 = vunpack.c.h.b16 %v164
    %v342 = vunpack.c.l.b16 %v165
    %v343 = vunpack.c.h.b16 %v165
    %v344 = vunpack.c.l.b16 %v166
    %v345 = vunpack.c.h.b16 %v166
    %v346 = vunpack.c.l.b16 %v167
    %v347 = vunpack.c.h.b16 %v167
    %v348 = vunpack.c.l.b16 %v168
    %v349 = vunpack.c.h.b16 %v168
    %v350 = vunpack.c.l.b16 %v169
    %v351 = vunpack.c.h.b16 %v169
    %v352 = vunpack.c.l.b16 %v170
    %v353 = vunpack.c.h.b16 %v170
    %v354 = vunpack.c.l.b16 %v171
    %v355 = vunpack.c.h.b16 %v171
    %v356 = vunpack.c.l.b16 %v172
    %v357 = vunpack.c.h.b16 %v172
    %v358 = vunpack.c.l.b16 %v173
    %v359 = vunpack.c.h.b16 %v173
    %v360 = vunpack.c.l.b16 %v174
    %v361 = vunpack.c.h.b16 %v174
    %v362 = vunpack.c.l.b16 %v175
    %v363 = vunpack.c.h.b16 %v175
    %v364 = vunpack.c.l.b16 %v176
    %v365 = vunpack.c.h.b16 %v176
    %v366 = vunpack.c.l.b16 %v177
    %v367 = vunpack.c.h.b16 %v177
    %v368 = vunpack.c.l.b16 %v178
    %v369 = vunpack.c.h.b16 %v178
    %v370 = vunpack.c.l.b16 %v179
    %v371 = vunpack.c.h.b16 %v179
    %v372 = vunpack.c.l.b16 %v180
    %v373 = vunpack.c.h.b16 %v180
    %v374 = vunpack.c.l.b16 %v181
    %v375 = vunpack.c.h.b16 %v181
    %v376 = vunpack.c.l.b16 %v182
    %v377 = vunpack.c.h.b16 %v182
    %v378 = vunpack.c.l.b16 %v183
    %v379 = vunpack.c.h.b16 %v183
    %v380 = vunpack.c.l.b16 %v184
    %v381 = vunpack.c.h.b16 %v184
    %v382 = vunpack.c.l.b16 %v185
    %v383 = vunpack.c.h.b16 %v185
    %v384 = vunpack.c.l.b16 %v186
    %v385 = vunpack.c.h.b16 %v186
    %v386 = vunpack.c.l.b16 %v187
    %v387 = vunpack.c.h.b16 %v187
    %v388 = vunpack.c.l.b16 %v188
    %v389 = vunpack.c.h.b16 %v188
    %v390 = vunpack.c.l.b16 %v189
    %v391 = vunpack.c.h.b16 %v189
    %v392 = vunpack.c.l.b16 %v190
    %v393 = vunpack.c.h.b16 %v190
    %v394 = vunpack.c.l.b16 %v191
    %v395 = vunpack.c.h.b16 %v191
    %v396 = vunpack.c.l.b16 %v192
    %v397 = vunpack.c.h.b16 %v192
    %v398 = vunpack.c.l.b16 %v193
    %v399 = vunpack.c.h.b16 %v193
    %v400 = vunpack.c.l.b16 %v194
    %v401 = vunpack.c.h.b16 %v194
    %v402 = vunpack.c.l.b16 %v195
    %v403 = vunpack.c.h.b16 %v195
    %v404 = vunpack.c.l.b16 %v196
    %v405 = vunpack.c.h.b16 %v196
    %v406 = vunpack.c.l.b16 %v197
    %v407 = vunpack.c.h.b16 %v197
    %v408 = vunpack.c.l.b16 %v198
    %v409 = vunpack.c.h.b16 %v198
    %v410 = vunpack.c.l.b16 %v199
    %v411 = vunpack.c.h.b16 %v199
    %v412 = vunpack.c.l.b16 %v200
    %v413 = vunpack.c.h.b16 %v200
    %v414 = vunpack.c.l.b16 %v201
    %v415 = vunpack.c.h.b16 %v201
    %v416 = vpack.c.b16 %v292, %v288
    %v417 = vpack.c.b16 %v293, %v289
    %v418 = vpack.c.b16 %v294, %v290
    %v419 = vpack.c.b16 %v295, %v291
    %v420 = vpack.c.b16 %v300, %v296
    %v421 = vpack.c.b16 %v301, %v297
    %v422 = vpack.c.b16 %v302, %v298
    %v423 = vpack.c.b16 %v303, %v299
    %v424 = vpack.c.b16 %v308, %v304
    %v425 = vpack.c.b16 %v309, %v305
    %v426 = vpack.c.b16 %v310, %v306
    %v427 = vpack.c.b16 %v311, %v307
    %v428 = vpack.c.b16 %v316, %v312
    %v429 = vpack.c.b16 %v317, %v313
    %v430 = vpack.c.b16 %v318, %v314
    %v431 = vpack.c.b16 %v319, %v315
    %v432 = vpack.c.b16 %v324, %v320
    %v433 = vpack.c.b16 %v325, %v321
    %v434 = vpack.c.b16 %v326, %v322
    %v435 = vpack.c.b16 %v327, %v323
    %v436 = vpack.c.b16 %v332, %v328
    %v437 = vpack.c.b16 %v333, %v329
    %v438 = vpack.c.b16 %v334, %v330
    %v439 = vpack.c.b16 %v335, %v331
    %v440 = vpack.c.b16 %v340, %v336
    %v441 = vpack.c.b16 %v341, %v337
    %v442 = vpack.c.b16 %v342, %v338
    %v443 = vpack.c.b16 %v343, %v339
    %v444 = vpack.c.b16 %v348, %v344
    %v445 = vpack.c.b16 %v349, %v345
    %v446 = vpack.c.b16 %v350, %v346
    %v447 = vpack.c.b16 %v351, %v347
    %v448 = vpack.c.b16 %v356, %v352
    %v449 = vpack.c.b16 %v357, %v353
    %v450 = vpack.c.b16 %v358, %v354
    %v451 = vpack.c.b16 %v359, %v355
    %v452 = vpack.c.b16 %v364, %v360
    %v453 = vpack.c.b16 %v365, %v361
    %v454 = vpack.c.b16 %v366, %v362
    %v455 = vpack.c.b16 %v367, %v363
    %v456 = vpack.c.b16 %v372, %v368
    %v457 = vpack.c.b16 %v373, %v369
    %v458 = vpack.c.b16 %v374, %v370
    %v459 = vpack.c.b16 %v375, %v371
    %v460 = vpack.c.b16 %v380, %v376
    %v461 = vpack.c.b16 %v381, %v377
    %v462 = vpack.c.b16 %v382, %v378
    %v463 = vpack.c.b16 %v383, %v379
    %v464 = vpack.c.b16 %v388, %v384
    %v465 = vpack.c.b16 %v389, %v385
    %v466 = vpack.c.b16 %v390, %v386
    %v467 = vpack.c.b16 %v391, %v387
    %v468 = vpack.c.b16 %v396, %v392
    %v469 = vpack.c.b16 %v397, %v393
    %v470 = vpack.c.b16 %v398, %v394
    %v471 = vpack.c.b16 %v399, %v395
    %v472 = vpack.c.b16 %v404, %v400
    %v473 = vpack.c.b16 %v405, %v401
    %v474 = vpack.c.b16 %v406, %v402
    %v475 = vpack.c.b16 %v407, %v403
    %v476 = vpack.c.b16 %v412, %v408
    %v477 = vpack.c.b16 %v413, %v409
    %v478 = vpack.c.b16 %v414, %v410
    %v479 = vpack.c.b16 %v415, %v411
    %544 = vmatprep.subr.bf16.mxu0 %v417
    %545 = vmatpush1.bf16.msra.mxu0 %v416
    %546 = vmatprep.subr.bf16.mxu0 %v421
    %547 = vmatpush1.bf16.msra.mxu0 %v420
    %548 = vmatprep.subr.bf16.mxu0 %v425
    %549 = vmatpush1.bf16.msra.mxu0 %v424
    %550 = vmatprep.subr.bf16.mxu0 %v429
    %551 = vmatpush1.bf16.msra.mxu0 %v428
    %552 = vmatprep.subr.bf16.mxu0 %v433
    %553 = vmatpush1.bf16.msra.mxu0 %v432
    %554 = vmatprep.subr.bf16.mxu0 %v437
    %555 = vmatpush1.bf16.msra.mxu0 %v436
    %556 = vmatprep.subr.bf16.mxu0 %v441
    %557 = vmatpush1.bf16.msra.mxu0 %v440
    %558 = vmatprep.subr.bf16.mxu0 %v445
    %559 = vmatpush1.bf16.msra.mxu0 %v444
    %560 = vmatprep.subr.bf16.mxu0 %v449
    %561 = vmatpush1.bf16.msra.mxu0 %v448
    %562 = vmatprep.subr.bf16.mxu0 %v453
    %563 = vmatpush1.bf16.msra.mxu0 %v452
    %564 = vmatprep.subr.bf16.mxu0 %v457
    %565 = vmatpush1.bf16.msra.mxu0 %v456
    %566 = vmatprep.subr.bf16.mxu0 %v461
    %567 = vmatpush1.bf16.msra.mxu0 %v460
    %568 = vmatprep.subr.bf16.mxu0 %v465
    %569 = vmatpush1.bf16.msra.mxu0 %v464
    %570 = vmatprep.subr.bf16.mxu0 %v469
    %571 = vmatpush1.bf16.msra.mxu0 %v468
    %572 = vmatprep.subr.bf16.mxu0 %v473
    %573 = vmatpush1.bf16.msra.mxu0 %v472
    %574 = vmatprep.subr.bf16.mxu0 %v477
    %575 = vmatpush1.bf16.msra.mxu0 %v476
    %576 = vmatprep.mubr.bf16.mxu0 %v137
    %577 = vmatmul.mubr.bf16.gmra.mrb[0].mxu0 %v136
    %v578 = vpop.f32.mrb[0].mxu0
    %v579 = vadd.f32 %v207, %v578
    %v580 = vpop.f32.mrb[0].mxu0
    %v581 = vadd.f32 %v211, %v580
    %v582 = vpop.f32.mrb[0].mxu0
    %v583 = vpop.f32.mrb[0].mxu0
    %584 = vdwg.mxu0
    %585 = vmatprep.subr.bf16.mxu0 %v419
    %586 = vmatpush1.bf16.msra.mxu0 %v418
    %587 = vmatprep.subr.bf16.mxu0 %v423
    %588 = vmatpush1.bf16.msra.mxu0 %v422
    %589 = vmatprep.subr.bf16.mxu0 %v427
    %590 = vmatpush1.bf16.msra.mxu0 %v426
    %591 = vmatprep.subr.bf16.mxu0 %v431
    %592 = vmatpush1.bf16.msra.mxu0 %v430
    %593 = vmatprep.subr.bf16.mxu0 %v435
    %594 = vmatpush1.bf16.msra.mxu0 %v434
    %595 = vmatprep.subr.bf16.mxu0 %v439
    %596 = vmatpush1.bf16.msra.mxu0 %v438
    %597 = vmatprep.subr.bf16.mxu0 %v443
    %598 = vmatpush1.bf16.msra.mxu0 %v442
    %599 = vmatprep.subr.bf16.mxu0 %v447
    %600 = vmatpush1.bf16.msra.mxu0 %v446
    %601 = vmatprep.subr.bf16.mxu0 %v451
    %602 = vmatpush1.bf16.msra.mxu0 %v450
    %603 = vmatprep.subr.bf16.mxu0 %v455
    %604 = vmatpush1.bf16.msra.mxu0 %v454
    %605 = vmatprep.subr.bf16.mxu0 %v459
    %606 = vmatpush1.bf16.msra.mxu0 %v458
    %607 = vmatprep.subr.bf16.mxu0 %v463
    %608 = vmatpush1.bf16.msra.mxu0 %v462
    %609 = vmatprep.subr.bf16.mxu0 %v467
    %610 = vmatpush1.bf16.msra.mxu0 %v466
    %611 = vmatprep.subr.bf16.mxu0 %v471
    %612 = vmatpush1.bf16.msra.mxu0 %v470
    %613 = vmatprep.subr.bf16.mxu0 %v475
    %614 = vmatpush1.bf16.msra.mxu0 %v474
    %615 = vmatprep.subr.bf16.mxu0 %v479
    %616 = vmatpush1.bf16.msra.mxu0 %v478
    %617 = vmatprep.mubr.bf16.mxu0 %v137
    %618 = vmatmul.mubr.bf16.gmra.mrb[0].mxu0 %v136
    %v619 = vpop.f32.mrb[0].mxu0
    %v620 = vadd.f32 %v215, %v619
    %v621 = vpop.f32.mrb[0].mxu0
    %v622 = vadd.f32 %v219, %v621
    %v623 = vpop.f32.mrb[0].mxu0
    %v624 = vpop.f32.mrb[0].mxu0
    %625 = vdwg.mxu0
    %v626 = vmax.f32 %v579, 0.0
    %v627 = vmax.f32 %v581, 0.0
    %v628 = vmax.f32 %v620, 0.0
    %v629 = vmax.f32 %v622, 0.0
    %v630 = vpack.c.bf16 %v626, %v626
    %v631 = vpack.c.bf16 %v627, %v627
    %v632 = vpack.c.bf16 %v628, %v628
    %v633 = vpack.c.bf16 %v629, %v629
    %v634 = vld [vmem:[#allocation4] sm:$0xf]
    %v635 = vld [vmem:[#allocation4 + $0x4] sm:$0xf]
    %v636 = vld [vmem:[#allocation4 + $0x8] sm:$0xf]
    %v637 = vld [vmem:[#allocation4 + $0xc] sm:$0xf]
    %v638 = vld [vmem:[#allocation4 + $0x10] sm:$0xf]
    %v639 = vld [vmem:[#allocation4 + $0x14] sm:$0xf]
    %v640 = vld [vmem:[#allocation4 + $0x18] sm:$0xf]
    %v641 = vld [vmem:[#allocation4 + $0x1c] sm:$0xf]
    %v642 = vld [vmem:[#allocation4 + $0x20] sm:$0xf]
    %v643 = vld [vmem:[#allocation4 + $0x24] sm:$0xf]
    %v644 = vld [vmem:[#allocation4 + $0x28] sm:$0xf]
    %v645 = vld [vmem:[#allocation4 + $0x2c] sm:$0xf]
    %v646 = vld [vmem:[#allocation4 + $0x30] sm:$0xf]
    %v647 = vld [vmem:[#allocation4 + $0x34] sm:$0xf]
    %v648 = vld [vmem:[#allocation4 + $0x38] sm:$0xf]
    %v649 = vld [vmem:[#allocation4 + $0x3c] sm:$0xf]
    %v650 = vld [vmem:[#allocation4 + $0x40] sm:$0xf]
    %v651 = vld [vmem:[#allocation4 + $0x44] sm:$0xf]
    %v652 = vld [vmem:[#allocation4 + $0x48] sm:$0xf]
    %v653 = vld [vmem:[#allocation4 + $0x4c] sm:$0xf]
    %v654 = vld [vmem:[#allocation4 + $0x50] sm:$0xf]
    %v655 = vld [vmem:[#allocation4 + $0x54] sm:$0xf]
    %v656 = vld [vmem:[#allocation4 + $0x58] sm:$0xf]
    %v657 = vld [vmem:[#allocation4 + $0x5c] sm:$0xf]
    %v658 = vld [vmem:[#allocation4 + $0x60] sm:$0xf]
    %v659 = vld [vmem:[#allocation4 + $0x64] sm:$0xf]
    %v660 = vld [vmem:[#allocation4 + $0x68] sm:$0xf]
    %v661 = vld [vmem:[#allocation4 + $0x6c] sm:$0xf]
    %v662 = vld [vmem:[#allocation4 + $0x70] sm:$0xf]
    %v663 = vld [vmem:[#allocation4 + $0x74] sm:$0xf]
    %v664 = vld [vmem:[#allocation4 + $0x78] sm:$0xf]
    %v665 = vld [vmem:[#allocation4 + $0x7c] sm:$0xf]
    %v666 = vld [vmem:[#allocation4 + $0x80] sm:$0xf]
    %v667 = vld [vmem:[#allocation4 + $0x84] sm:$0xf]
    %v668 = vld [vmem:[#allocation4 + $0x88] sm:$0xf]
    %v669 = vld [vmem:[#allocation4 + $0x8c] sm:$0xf]
    %v670 = vld [vmem:[#allocation4 + $0x90] sm:$0xf]
    %v671 = vld [vmem:[#allocation4 + $0x94] sm:$0xf]
    %v672 = vld [vmem:[#allocation4 + $0x98] sm:$0xf]
    %v673 = vld [vmem:[#allocation4 + $0x9c] sm:$0xf]
    %v674 = vld [vmem:[#allocation4 + $0xa0] sm:$0xf]
    %v675 = vld [vmem:[#allocation4 + $0xa4] sm:$0xf]
    %v676 = vld [vmem:[#allocation4 + $0xa8] sm:$0xf]
    %v677 = vld [vmem:[#allocation4 + $0xac] sm:$0xf]
    %v678 = vld [vmem:[#allocation4 + $0xb0] sm:$0xf]
    %v679 = vld [vmem:[#allocation4 + $0xb4] sm:$0xf]
    %v680 = vld [vmem:[#allocation4 + $0xb8] sm:$0xf]
    %v681 = vld [vmem:[#allocation4 + $0xbc] sm:$0xf]
    %v682 = vld [vmem:[#allocation4 + $0xc0] sm:$0xf]
    %v683 = vld [vmem:[#allocation4 + $0xc4] sm:$0xf]
    %v684 = vld [vmem:[#allocation4 + $0xc8] sm:$0xf]
    %v685 = vld [vmem:[#allocation4 + $0xcc] sm:$0xf]
    %v686 = vld [vmem:[#allocation4 + $0xd0] sm:$0xf]
    %v687 = vld [vmem:[#allocation4 + $0xd4] sm:$0xf]
    %v688 = vld [vmem:[#allocation4 + $0xd8] sm:$0xf]
    %v689 = vld [vmem:[#allocation4 + $0xdc] sm:$0xf]
    %v690 = vld [vmem:[#allocation4 + $0xe0] sm:$0xf]
    %v691 = vld [vmem:[#allocation4 + $0xe4] sm:$0xf]
    %v692 = vld [vmem:[#allocation4 + $0xe8] sm:$0xf]
    %v693 = vld [vmem:[#allocation4 + $0xec] sm:$0xf]
    %v694 = vld [vmem:[#allocation4 + $0xf0] sm:$0xf]
    %v695 = vld [vmem:[#allocation4 + $0xf4] sm:$0xf]
    %v696 = vld [vmem:[#allocation4 + $0xf8] sm:$0xf]
    %v697 = vld [vmem:[#allocation4 + $0xfc] sm:$0xf]
    %v698 = vld [vmem:[%s6] sm:$0x1]
    %v700 = vlaneseq
    %v701 = vshrl.u32 %v700, 7
    %v702 = vsub.s32 0, %v701
    %v703 = vrot.slane %v698, %v702
    %v769 = vunpack.c.l.b16 %v634
    %v770 = vunpack.c.l.b16 %v635
    %v771 = vunpack.c.l.b16 %v636
    %v772 = vunpack.c.l.b16 %v637
    %v773 = vunpack.c.l.b16 %v638
    %v774 = vunpack.c.l.b16 %v639
    %v775 = vunpack.c.l.b16 %v640
    %v776 = vunpack.c.l.b16 %v641
    %v777 = vunpack.c.l.b16 %v642
    %v778 = vunpack.c.l.b16 %v643
    %v779 = vunpack.c.l.b16 %v644
    %v780 = vunpack.c.l.b16 %v645
    %v781 = vunpack.c.l.b16 %v646
    %v782 = vunpack.c.l.b16 %v647
    %v783 = vunpack.c.l.b16 %v648
    %v784 = vunpack.c.l.b16 %v649
    %v785 = vunpack.c.l.b16 %v650
    %v786 = vunpack.c.l.b16 %v651
    %v787 = vunpack.c.l.b16 %v652
    %v788 = vunpack.c.l.b16 %v653
    %v789 = vunpack.c.l.b16 %v654
    %v790 = vunpack.c.l.b16 %v655
    %v791 = vunpack.c.l.b16 %v656
    %v792 = vunpack.c.l.b16 %v657
    %v793 = vunpack.c.l.b16 %v658
    %v794 = vunpack.c.l.b16 %v659
    %v795 = vunpack.c.l.b16 %v660
    %v796 = vunpack.c.l.b16 %v661
    %v797 = vunpack.c.l.b16 %v662
    %v798 = vunpack.c.l.b16 %v663
    %v799 = vunpack.c.l.b16 %v664
    %v800 = vunpack.c.l.b16 %v665
    %v801 = vunpack.c.l.b16 %v666
    %v802 = vunpack.c.l.b16 %v667
    %v803 = vunpack.c.l.b16 %v668
    %v804 = vunpack.c.l.b16 %v669
    %v805 = vunpack.c.l.b16 %v670
    %v806 = vunpack.c.l.b16 %v671
    %v807 = vunpack.c.l.b16 %v672
    %v808 = vunpack.c.l.b16 %v673
    %v809 = vunpack.c.l.b16 %v674
    %v810 = vunpack.c.l.b16 %v675
    %v811 = vunpack.c.l.b16 %v676
    %v812 = vunpack.c.l.b16 %v677
    %v813 = vunpack.c.l.b16 %v678
    %v814 = vunpack.c.l.b16 %v679
    %v815 = vunpack.c.l.b16 %v680
    %v816 = vunpack.c.l.b16 %v681
    %v817 = vunpack.c.l.b16 %v682
    %v818 = vunpack.c.l.b16 %v683
    %v819 = vunpack.c.l.b16 %v684
    %v820 = vunpack.c.l.b16 %v685
    %v821 = vunpack.c.l.b16 %v686
    %v822 = vunpack.c.l.b16 %v687
    %v823 = vunpack.c.l.b16 %v688
    %v824 = vunpack.c.l.b16 %v689
    %v825 = vunpack.c.l.b16 %v690
    %v826 = vunpack.c.l.b16 %v691
    %v827 = vunpack.c.l.b16 %v692
    %v828 = vunpack.c.l.b16 %v693
    %v829 = vunpack.c.l.b16 %v694
    %v830 = vunpack.c.l.b16 %v695
    %v831 = vunpack.c.l.b16 %v696
    %v832 = vunpack.c.l.b16 %v697
    %v833 = vpack.c.b16 %v770, %v769
    %v834 = vpack.c.b16 %v772, %v771
    %v835 = vpack.c.b16 %v774, %v773
    %v836 = vpack.c.b16 %v776, %v775
    %v837 = vpack.c.b16 %v778, %v777
    %v838 = vpack.c.b16 %v780, %v779
    %v839 = vpack.c.b16 %v782, %v781
    %v840 = vpack.c.b16 %v784, %v783
    %v841 = vpack.c.b16 %v786, %v785
    %v842 = vpack.c.b16 %v788, %v787
    %v843 = vpack.c.b16 %v790, %v789
    %v844 = vpack.c.b16 %v792, %v791
    %v845 = vpack.c.b16 %v794, %v793
    %v846 = vpack.c.b16 %v796, %v795
    %v847 = vpack.c.b16 %v798, %v797
    %v848 = vpack.c.b16 %v800, %v799
    %v849 = vpack.c.b16 %v802, %v801
    %v850 = vpack.c.b16 %v804, %v803
    %v851 = vpack.c.b16 %v806, %v805
    %v852 = vpack.c.b16 %v808, %v807
    %v853 = vpack.c.b16 %v810, %v809
    %v854 = vpack.c.b16 %v812, %v811
    %v855 = vpack.c.b16 %v814, %v813
    %v856 = vpack.c.b16 %v816, %v815
    %v857 = vpack.c.b16 %v818, %v817
    %v858 = vpack.c.b16 %v820, %v819
    %v859 = vpack.c.b16 %v822, %v821
    %v860 = vpack.c.b16 %v824, %v823
    %v861 = vpack.c.b16 %v826, %v825
    %v862 = vpack.c.b16 %v828, %v827
    %v863 = vpack.c.b16 %v830, %v829
    %v864 = vpack.c.b16 %v832, %v831
    %897 = vmatprep.subr.bf16.mxu0 0
    %898 = vmatpush1.bf16.msra.mxu0 %v833
    %899 = vmatprep.subr.bf16.mxu0 0
    %900 = vmatpush1.bf16.msra.mxu0 %v834
    %901 = vmatprep.subr.bf16.mxu0 0
    %902 = vmatpush1.bf16.msra.mxu0 %v835
    %903 = vmatprep.subr.bf16.mxu0 0
    %904 = vmatpush1.bf16.msra.mxu0 %v836
    %905 = vmatprep.subr.bf16.mxu0 0
    %906 = vmatpush1.bf16.msra.mxu0 %v837
    %907 = vmatprep.subr.bf16.mxu0 0
    %908 = vmatpush1.bf16.msra.mxu0 %v838
    %909 = vmatprep.subr.bf16.mxu0 0
    %910 = vmatpush1.bf16.msra.mxu0 %v839
    %911 = vmatprep.subr.bf16.mxu0 0
    %912 = vmatpush1.bf16.msra.mxu0 %v840
    %913 = vmatprep.subr.bf16.mxu0 0
    %914 = vmatpush1.bf16.msra.mxu0 %v841
    %915 = vmatprep.subr.bf16.mxu0 0
    %916 = vmatpush1.bf16.msra.mxu0 %v842
    %917 = vmatprep.subr.bf16.mxu0 0
    %918 = vmatpush1.bf16.msra.mxu0 %v843
    %919 = vmatprep.subr.bf16.mxu0 0
    %920 = vmatpush1.bf16.msra.mxu0 %v844
    %921 = vmatprep.subr.bf16.mxu0 0
    %922 = vmatpush1.bf16.msra.mxu0 %v845
    %923 = vmatprep.subr.bf16.mxu0 0
    %924 = vmatpush1.bf16.msra.mxu0 %v846
    %925 = vmatprep.subr.bf16.mxu0 0
    %926 = vmatpush1.bf16.msra.mxu0 %v847
    %927 = vmatprep.subr.bf16.mxu0 0
    %928 = vmatpush1.bf16.msra.mxu0 %v848
    %929 = vmatprep.mubr.bf16.mxu0 %v631
    %930 = vmatmul.mubr.bf16.gmra.mrb[0].mxu0 %v630
    %v931 = vpop.f32.mrb[0].mxu0
    %v932 = vadd.f32 %v703, %v931
    %v933 = vpop.f32.mrb[0].mxu0
    %v934 = vpop.f32.mrb[0].mxu0
    %v935 = vpop.f32.mrb[0].mxu0
    %936 = vdwg.mxu0
    %937 = vmatprep.subr.bf16.mxu0 0
    %938 = vmatpush1.bf16.msra.mxu0 %v849
    %939 = vmatprep.subr.bf16.mxu0 0
    %940 = vmatpush1.bf16.msra.mxu0 %v850
    %941 = vmatprep.subr.bf16.mxu0 0
    %942 = vmatpush1.bf16.msra.mxu0 %v851
    %943 = vmatprep.subr.bf16.mxu0 0
    %944 = vmatpush1.bf16.msra.mxu0 %v852
    %945 = vmatprep.subr.bf16.mxu0 0
    %946 = vmatpush1.bf16.msra.mxu0 %v853
    %947 = vmatprep.subr.bf16.mxu0 0
    %948 = vmatpush1.bf16.msra.mxu0 %v854
    %949 = vmatprep.subr.bf16.mxu0 0
    %950 = vmatpush1.bf16.msra.mxu0 %v855
    %951 = vmatprep.subr.bf16.mxu0 0
    %952 = vmatpush1.bf16.msra.mxu0 %v856
    %953 = vmatprep.subr.bf16.mxu0 0
    %954 = vmatpush1.bf16.msra.mxu0 %v857
    %955 = vmatprep.subr.bf16.mxu0 0
    %956 = vmatpush1.bf16.msra.mxu0 %v858
    %957 = vmatprep.subr.bf16.mxu0 0
    %958 = vmatpush1.bf16.msra.mxu0 %v859
    %959 = vmatprep.subr.bf16.mxu0 0
    %960 = vmatpush1.bf16.msra.mxu0 %v860
    %961 = vmatprep.subr.bf16.mxu0 0
    %962 = vmatpush1.bf16.msra.mxu0 %v861
    %963 = vmatprep.subr.bf16.mxu0 0
    %964 = vmatpush1.bf16.msra.mxu0 %v862
    %965 = vmatprep.subr.bf16.mxu0 0
    %966 = vmatpush1.bf16.msra.mxu0 %v863
    %967 = vmatprep.subr.bf16.mxu0 0
    %968 = vmatpush1.bf16.msra.mxu0 %v864
    %969 = vmatprep.mubr.bf16.mxu0 %v633
    %970 = vmatmul.mubr.bf16.gmra.mrb[0].mxu0 %v632
    %v971 = vpop.f32.mrb[0].mxu0
    %v972 = vadd.f32 %v932, %v971
    %v973 = vpop.f32.mrb[0].mxu0
    %v974 = vpop.f32.mrb[0].mxu0
    %v975 = vpop.f32.mrb[0].mxu0
    %976 = vdwg.mxu0
    %v977 = vxor.u32 %v972, 2147483648
    %v978 = vmul.f32 %v977, 1.442695
    %v979 = vpow.pop %v978
    %v980 = vadd.f32 %v979, 1.0
    %v981 = vrcp.pop %v980
    %v982 = vmul.f32 1.0, %v981
    %983 = vst [vmem:[%s7] sm:$0xff] %v982
    // Predicated region
    $region38: #{copsl_forward.1} parent=1 // pred_check
      _
    $region39: #{copsl_forward.1} parent=1 // pred_check_branch
      %985 = sbr.rel (0) target = $region41
    $region40: #{copsl_forward.1} parent=1 // pred_region
      _
    $region41: #{copsl_forward.1} parent=1 // pred_fallthru
      _
    // Predicated region
    $region42: #{copsl_forward.1} parent=1 // pred_check
      _
    $region43: #{copsl_forward.1} parent=1 // pred_check_branch
      %987 = sbr.rel (0) target = $region45
    $region44: #{copsl_forward.1} parent=1 // pred_region
      _
    $region45: #{copsl_forward.1} parent=1 // pred_fallthru
      _
    %988 = vsyncpa [#allocation3], 1
    %989 = vsyncpa [#allocation5], 1

</llo_original>
